<compile_context>
chip_gen: v7x
topology: tpu7x:2x2x1
jax: 0.10.0
libtpu: 0.0.40
codegen_flags: <defaults>
</compile_context>

<pallas_src>
import functools

import numpy as np
import jax
import jax.numpy as jnp
from jax.experimental import pallas as pl
from jax.experimental.pallas import tpu as pltpu


def _round_up(x, m):
    return (x + m - 1) // m * m


# ------------------------------------------------------------------ kernel

def _stft_mag_kernel(x_ref, dft_ref, o_ref, *, R, TM, Fp):
    """One batch element, one tile of TM frames.

    x_ref  : (S, hop)        strip matrix of the reflect-padded signal (VMEM resident)
    dft_ref: (R, hop, 2*Fp)  windowed strip-DFT constant, columns = [cos | -sin]
    o_ref  : (TM, Fp)        magnitude tile (frames on sublanes, freq on lanes)
    """
    mt = pl.program_id(1)
    base = pl.multiple_of(mt * TM, TM)

    acc = jnp.zeros((TM, 2 * Fp), jnp.float32)
    for r in range(R):                                    # static, small (nfft // hop)
        strip = x_ref[pl.ds(base + r, TM), :]             # (TM, hop), shifted window
        acc = acc + jnp.dot(strip, dft_ref[r],
                            preferred_element_type=jnp.float32)

    re = acc[:, :Fp]
    im = acc[:, Fp:]
    o_ref[...] = jnp.sqrt(re * re + im * im).astype(o_ref.dtype)


# ------------------------------------------------------------- constants

def _make_strip_dft(nfft, hop, Fp):
    """Windowed one-sided DFT matrix, reshaped into (R, hop, 2*Fp) strips."""
    N = nfft
    F_ = N // 2 + 1
    R = N // hop
    n = np.arange(N)
    win = 0.5 * (1.0 - np.cos(2.0 * np.pi * n / N))       # torch.hann_window (periodic)
    f = np.arange(F_)
    ang = 2.0 * np.pi * np.outer(n, f) / N                # (N, F_)
    dft = np.zeros((N, 2 * Fp), np.float32)
    dft[:, :F_] = win[:, None] * np.cos(ang)
    dft[:, Fp:Fp + F_] = -win[:, None] * np.sin(ang)
    return jnp.asarray(dft.reshape(R, hop, 2 * Fp))


# ------------------------------------------------------------- forward

@functools.partial(jax.jit, static_argnames=("nfft", "hop", "frame_tile"))
def stft_mag(x, nfft=1024, hop=256, frame_tile=8):
    """JAX/Pallas equivalent of STFTMag.forward."""
    squeeze = (x.ndim == 1)
    if squeeze:
        x = x[None]
    B, T = x.shape
    N = nfft
    F_ = N // 2 + 1
    if N % hop != 0:
        # TODO(synk): general hop (not dividing nfft) needs per-sample framing.
        raise NotImplementedError("stft_mag requires hop | nfft (torch default 1024/256 ok)")
    R = N // hop

    pad_each = N // 2
    T_pad = T + 2 * pad_each
    M = 1 + (T_pad - N) // hop                            # torch.stft frame count
    Fp = _round_up(F_, 128)                               # lane-dense freq axis
    TM = frame_tile
    Mp = _round_up(M, TM)
    # strips needed so every (possibly padded) frame index stays in bounds
    S = max(Mp + R - 1, -(-(T_pad) // hop))

    # center=True reflect pad, then zero-pad the tail and reshape into hop-strips.
    xp = jnp.pad(x.astype(jnp.float32), ((0, 0), (pad_each, pad_each)), mode="reflect")
    xp = jnp.pad(xp, ((0, 0), (0, S * hop - xp.shape[1])))
    strips = xp.reshape(B, S, hop)

    dft = _make_strip_dft(N, hop, Fp)

    out = pl.pallas_call(
        functools.partial(_stft_mag_kernel, R=R, TM=TM, Fp=Fp),
        out_shape=jax.ShapeDtypeStruct((B, Mp, Fp), jnp.float32),
        grid=(B, Mp // TM),
        in_specs=[
            pl.BlockSpec((None, S, hop), lambda b, mt: (b, 0, 0)),
            pl.BlockSpec((R, hop, 2 * Fp), lambda b, mt: (0, 0, 0)),
        ],
        out_specs=pl.BlockSpec((None, TM, Fp), lambda b, mt: (b, mt, 0)),
        compiler_params=pltpu.CompilerParams(
            dimension_semantics=("parallel", "parallel"),
            vmem_limit_bytes=48 * 1024 * 1024,
        ),
    )(strips, dft)

    # drop frequency/frame padding, place freq before frames (torch layout)
    mag = jnp.swapaxes(out[:, :M, :F_], 1, 2)             # (B, F_, M)
    return mag[0] if squeeze else mag


# ------------------------------------------------------------- reference

def _stft_mag_reference(x, nfft, hop):
    """float64 numpy reference (same math as torch.stft + L2 norm over re/im)."""
    xnp = np.asarray(x, np.float64)
    B, T = xnp.shape
    N = nfft
    pad = N // 2
    xp = np.pad(xnp, ((0, 0), (pad, pad)), mode="reflect")
    M = 1 + (xp.shape[1] - N) // hop
    n = np.arange(N)
    win = 0.5 * (1.0 - np.cos(2.0 * np.pi * n / N))
    frames = np.stack([xp[:, m * hop:m * hop + N] for m in range(M)], axis=1)  # (B,M,N)
    spec = np.fft.rfft(frames * win, n=N, axis=-1)        # (B, M, F_)
    return np.abs(spec).transpose(0, 2, 1)                # (B, F_, M)


# ------------------------------------------------------------------ main

if __name__ == "__main__":
    key = jax.random.PRNGKey(0)
    B, T = 2, 2048
    nfft, hop = 512, 128           # small config consistent with STFTMag(nfft, hop)

    x = jax.random.normal(key, (B, T), jnp.float32)

    mag = stft_mag(x, nfft=nfft, hop=hop)
    jax.block_until_ready(mag)

    F_ = nfft // 2 + 1
    M = 1 + T // hop
    assert mag.shape == (B, F_, M), mag.shape
    assert mag.dtype == jnp.float32
    assert bool(jnp.all(jnp.isfinite(mag)))

    ref = _stft_mag_reference(np.asarray(x), nfft, hop)
    err = float(np.max(np.abs(np.asarray(mag) - ref)))
    scale = float(np.max(np.abs(ref))) + 1e-6
    assert err <= 2e-2 * scale + 1e-3, f"max abs err {err} vs scale {scale}"

    print("KERNEL_OK")
</pallas_src>

<mosaic_0001>
module attributes {stable_mosaic.version = 11 : i64} {
  func.func @_stft_mag_kernel(%arg0: i32, %arg1: i32, %arg2: memref<1x27x128xf32, #tpu.memory_space<vmem>>, %arg3: memref<4x128x768xf32, #tpu.memory_space<vmem>>, %arg4: memref<1x8x384xf32, #tpu.memory_space<vmem>>) attributes {dimension_semantics = [#tpu.dimension_semantics<parallel>, #tpu.dimension_semantics<parallel>], iteration_bounds = array<i64: 2, 3>, scalar_prefetch = 0 : i64, scratch_operands = 0 : i64, tpu.core_type = #tpu.core_type<tc>, window_params = [{transform_indices = @transform_0, window_bounds = array<i64: 1, 27, 128>}, {pipeline_mode = #tpu.pipeline_mode<synchronous>, transform_indices = @transform_1, window_bounds = array<i64: 4, 128, 768>}, {transform_indices = @transform_2, window_bounds = array<i64: 1, 8, 384>}]} {
    %c8_i32 = arith.constant 8 : i32
    %0 = arith.muli %arg1, %c8_i32 : i32
    %1 = tpu.assume_multiple %0, 8 : i32
    %cst = arith.constant 0.000000e+00 : f32
    %2 = vector.broadcast %cst : f32 to vector<8x768xf32>
    %c0_i32 = arith.constant 0 : i32
    %3 = arith.addi %1, %c0_i32 : i32
    %c0 = arith.constant 0 : index
    %4 = arith.index_cast %3 : i32 to index
    %c0_0 = arith.constant 0 : index
    %5 = vector.load %arg2[%c0, %4, %c0_0] : memref<1x27x128xf32, #tpu.memory_space<vmem>>, vector<1x8x128xf32>
    %6 = vector.shape_cast %5 : vector<1x8x128xf32> to vector<8x128xf32>
    %c0_1 = arith.constant 0 : index
    %c0_2 = arith.constant 0 : index
    %c0_3 = arith.constant 0 : index
    %7 = vector.load %arg3[%c0_1, %c0_2, %c0_3] : memref<4x128x768xf32, #tpu.memory_space<vmem>>, vector<1x128x768xf32>
    %8 = vector.shape_cast %7 : vector<1x128x768xf32> to vector<128x768xf32>
    %cst_4 = arith.constant dense<0.000000e+00> : vector<8x768xf32>
    %9 = tpu.matmul %6, %8, %cst_4 {dimension_numbers = #tpu.dot_dimension_numbers<[1], [0], [0], [1], [0, 0, 1, 1], [], []>} : vector<8x128xf32>, vector<128x768xf32>, vector<8x768xf32> -> vector<8x768xf32>
    %10 = arith.addf %2, %9 : vector<8x768xf32>
    %c1_i32 = arith.constant 1 : i32
    %11 = arith.addi %1, %c1_i32 : i32
    %c0_5 = arith.constant 0 : index
    %12 = arith.index_cast %11 : i32 to index
    %c0_6 = arith.constant 0 : index
    %13 = vector.load %arg2[%c0_5, %12, %c0_6] : memref<1x27x128xf32, #tpu.memory_space<vmem>>, vector<1x8x128xf32>
    %14 = vector.shape_cast %13 : vector<1x8x128xf32> to vector<8x128xf32>
    %c1 = arith.constant 1 : index
    %c0_7 = arith.constant 0 : index
    %c0_8 = arith.constant 0 : index
    %15 = vector.load %arg3[%c1, %c0_7, %c0_8] : memref<4x128x768xf32, #tpu.memory_space<vmem>>, vector<1x128x768xf32>
    %16 = vector.shape_cast %15 : vector<1x128x768xf32> to vector<128x768xf32>
    %cst_9 = arith.constant dense<0.000000e+00> : vector<8x768xf32>
    %17 = tpu.matmul %14, %16, %cst_9 {dimension_numbers = #tpu.dot_dimension_numbers<[1], [0], [0], [1], [0, 0, 1, 1], [], []>} : vector<8x128xf32>, vector<128x768xf32>, vector<8x768xf32> -> vector<8x768xf32>
    %18 = arith.addf %10, %17 : vector<8x768xf32>
    %c2_i32 = arith.constant 2 : i32
    %19 = arith.addi %1, %c2_i32 : i32
    %c0_10 = arith.constant 0 : index
    %20 = arith.index_cast %19 : i32 to index
    %c0_11 = arith.constant 0 : index
    %21 = vector.load %arg2[%c0_10, %20, %c0_11] : memref<1x27x128xf32, #tpu.memory_space<vmem>>, vector<1x8x128xf32>
    %22 = vector.shape_cast %21 : vector<1x8x128xf32> to vector<8x128xf32>
    %c2 = arith.constant 2 : index
    %c0_12 = arith.constant 0 : index
    %c0_13 = arith.constant 0 : index
    %23 = vector.load %arg3[%c2, %c0_12, %c0_13] : memref<4x128x768xf32, #tpu.memory_space<vmem>>, vector<1x128x768xf32>
    %24 = vector.shape_cast %23 : vector<1x128x768xf32> to vector<128x768xf32>
    %cst_14 = arith.constant dense<0.000000e+00> : vector<8x768xf32>
    %25 = tpu.matmul %22, %24, %cst_14 {dimension_numbers = #tpu.dot_dimension_numbers<[1], [0], [0], [1], [0, 0, 1, 1], [], []>} : vector<8x128xf32>, vector<128x768xf32>, vector<8x768xf32> -> vector<8x768xf32>
    %26 = arith.addf %18, %25 : vector<8x768xf32>
    %c3_i32 = arith.constant 3 : i32
    %27 = arith.addi %1, %c3_i32 : i32
    %c0_15 = arith.constant 0 : index
    %28 = arith.index_cast %27 : i32 to index
    %c0_16 = arith.constant 0 : index
    %29 = vector.load %arg2[%c0_15, %28, %c0_16] : memref<1x27x128xf32, #tpu.memory_space<vmem>>, vector<1x8x128xf32>
    %30 = vector.shape_cast %29 : vector<1x8x128xf32> to vector<8x128xf32>
    %c3 = arith.constant 3 : index
    %c0_17 = arith.constant 0 : index
    %c0_18 = arith.constant 0 : index
    %31 = vector.load %arg3[%c3, %c0_17, %c0_18] : memref<4x128x768xf32, #tpu.memory_space<vmem>>, vector<1x128x768xf32>
    %32 = vector.shape_cast %31 : vector<1x128x768xf32> to vector<128x768xf32>
    %cst_19 = arith.constant dense<0.000000e+00> : vector<8x768xf32>
    %33 = tpu.matmul %30, %32, %cst_19 {dimension_numbers = #tpu.dot_dimension_numbers<[1], [0], [0], [1], [0, 0, 1, 1], [], []>} : vector<8x128xf32>, vector<128x768xf32>, vector<8x768xf32> -> vector<8x768xf32>
    %34 = arith.addf %26, %33 : vector<8x768xf32>
    %35 = vector.extract_strided_slice %34 {offsets = [0, 0], sizes = [8, 384], strides = [1, 1]} : vector<8x768xf32> to vector<8x384xf32>
    %36 = vector.extract_strided_slice %34 {offsets = [0, 384], sizes = [8, 384], strides = [1, 1]} : vector<8x768xf32> to vector<8x384xf32>
    %37 = arith.mulf %35, %35 : vector<8x384xf32>
    %38 = arith.mulf %36, %36 : vector<8x384xf32>
    %39 = arith.addf %37, %38 : vector<8x384xf32>
    %40 = math.sqrt %39 : vector<8x384xf32>
    %c0_20 = arith.constant 0 : index
    %c0_21 = arith.constant 0 : index
    %c0_22 = arith.constant 0 : index
    %41 = vector.load %arg4[%c0_20, %c0_21, %c0_22] : memref<1x8x384xf32, #tpu.memory_space<vmem>>, vector<1x8x384xf32>
    %42 = vector.shape_cast %41 : vector<1x8x384xf32> to vector<8x384xf32>
    %43 = vector.shape_cast %40 : vector<8x384xf32> to vector<1x8x384xf32>
    tpu.vector_store %arg4[%c0_20, %c0_21, %c0_22], %43 {strides = array<i32>} : memref<1x8x384xf32, #tpu.memory_space<vmem>>, vector<1x8x384xf32>,
    return
  }
  func.func @transform_0(%arg0: i32, %arg1: i32) -> (i32, i32, i32) {
    %c0_i32 = arith.constant 0 : i32
    %c0_i32_0 = arith.constant 0 : i32
    %c0_i32_1 = arith.constant 0 : i32
    return %arg0, %c0_i32, %c0_i32_0 : i32, i32, i32
  }
  func.func @transform_1(%arg0: i32, %arg1: i32) -> (i32, i32, i32) {
    %c0_i32 = arith.constant 0 : i32
    %c0_i32_0 = arith.constant 0 : i32
    %c0_i32_1 = arith.constant 0 : i32
    %c0_i32_2 = arith.constant 0 : i32
    return %c0_i32, %c0_i32_0, %c0_i32_1 : i32, i32, i32
  }
  func.func @transform_2(%arg0: i32, %arg1: i32) -> (i32, i32, i32) {
    %c0_i32 = arith.constant 0 : i32
    %c0_i32_0 = arith.constant 0 : i32
    return %arg0, %arg1, %c0_i32 : i32, i32, i32
  }
}

</mosaic_0001>

<llo_original>
// kernel: stft_mag.1
$region0: #{stft_mag.1}
  #allocation0 [shape = 'u32[]', space=smem, size = 0x4, offset = 0x4, fixed_abs, tag = 'smem constant byte address 0x4 - core index']
  #allocation1 [shape = 'u32[144,128]{1,0:T(1,128)}', space=vmem, size = 0x12000, scoped, tag = 'internal scratch']
  %s0 = inlined_call_operand.vmem [shape: f32[2,27,128], index: 0, kind: input, shape index: {}]
  %s1 = inlined_call_operand.hbm [shape: f32[4,128,768], index: 1, kind: input, shape index: {}]
  %s2 = inlined_call_operand.vmem [shape: f32[2,24,384], index: 2, kind: output, shape index: {}]
  %s3 = sld [smem:[#allocation0]]
  $region45: #{stft_mag.1} parent=0
    _
  %s5 = ssub.s32 1, %s3
  %s6 = scalar_select 0, %s5, %s3
  $region1: #{stft_mag.1} parent=0
    #allocation2 [shape = 'u8[1572864]{0}', space=vmem, size = 0x180000, scoped, tag = 'input window, operand 1, single buffered']
    #allocation3 [shape = 's32[2]{0}', space=sflag, size = 0x8, scoped, tag = 'scoped memory for stft_mag.1']
    %7 = vsyncpa [#allocation3], 0
    loop: start=0, step=1, limit=8
    $region2: #{stft_mag.1} parent=1 // loop_pre_header
      _
    $region3: #{stft_mag.1} parent=1 // loop_header
      %s9 = sphi 0, %s13
      %p10 = scmp.ge.s32.totalorder %s9, 8
      %s16 = sphi 0, %s28
      %s17 = sphi 0, %s24
      %s18 = sphi 0, %s16
      %s19 = sphi 0, %s17
      %s20 = sphi 0, %s18
      %s21 = sphi 0, %s19
      %s31 = sphi 0, %s33
      %s34 = sphi 0, %s31
      %s35 = sphi 0, %s34
      %s51 = sphi 0, %s35
      %s55 = sphi 0, %s55
      %s57 = sphi 0, %s55
      %s58 = sphi 0, %s57
      %s72 = sphi 0, %s58
      %s80 = sphi 0, %s82
      %s83 = sphi 0, %s80
      %s84 = sphi 0, %s83
      %s100 = sphi 0, %s84
    $region4: #{stft_mag.1} parent=1 // loop_header_branch
      %12 = sbr.rel (%p10) target = $region8
    $region5: #{stft_mag.1} parent=1 // loop_body
      %s14 = ssub.s32 %s9, 1
      %s15 = ssub.s32 %s9, 2
      %s22 = sadd.s32 1, %s17
      %p23 = scmp.ge.s32.totalorder %s22, 3
      %s24 = scalar_select %p23, 0, %s22
      %s25 = sadd.s32 1, %s16
      %s26 = scalar_select %p23, %s25, %s16
      %p27 = scmp.ge.s32.totalorder %s26, 2
      %s28 = scalar_select %p27, 0, %s26
      %s29 = ssub.s32 %s16, %s28
      %p30 = scmp.eq.s32.totalorder %s29, 0
      %s32 = sadd.s32 %s31, 1
      %s33 = scalar_select %p30, %s31, %s32
      %p36 = pneg %p30
      %p37 = scmp.eq.s32.totalorder %s9, 5
      %p38 = por %p36, %p37
      %p39 = scmp.ne.s32.totalorder %s31, %s34
      %p40 = scmp.eq.s32.totalorder %s9, 0
      %p41 = por %p39, %p40
      %p42 = scmp.ne.s32.totalorder %s31, %s34
      %p43 = scmp.eq.s32.totalorder %s14, 5
      %p44 = por %p42, %p43
      %p45 = scmp.ne.s32.totalorder %s34, %s35
      %p46 = scmp.eq.s32.totalorder %s14, 0
      %p47 = por %p45, %p46
      %p48 = scmp.ne.s32.totalorder %s34, %s35
      %p49 = scmp.eq.s32.totalorder %s15, 5
      %p50 = por %p48, %p49
      %p52 = scmp.ne.s32.totalorder %s35, %s51
      %p53 = scmp.eq.s32.totalorder %s15, 0
      %p54 = por %p52, %p53
      %s56 = sadd.s32 %s55, 1
      %p59 = scmp.eq.s32.totalorder %s9, 5
      %p60 = scmp.ne.s32.totalorder %s55, %s57
      %p61 = scmp.eq.s32.totalorder %s9, 0
      %p62 = por %p60, %p61
      %p63 = scmp.ne.s32.totalorder %s55, %s57
      %p64 = scmp.eq.s32.totalorder %s14, 5
      %p65 = por %p63, %p64
      %p66 = scmp.ne.s32.totalorder %s57, %s58
      %p67 = scmp.eq.s32.totalorder %s14, 0
      %p68 = por %p66, %p67
      %p69 = scmp.ne.s32.totalorder %s57, %s58
      %p70 = scmp.eq.s32.totalorder %s15, 5
      %p71 = por %p69, %p70
      %p73 = scmp.ne.s32.totalorder %s58, %s72
      %p74 = scmp.eq.s32.totalorder %s15, 0
      %p75 = por %p73, %p74
      %s76 = ssub.s32 %s16, %s28
      %s77 = ssub.s32 %s17, %s24
      %s78 = sor.u32 %s76, %s77
      %p79 = scmp.eq.s32.totalorder %s78, 0
      %s81 = sadd.s32 %s80, 1
      %s82 = scalar_select %p79, %s80, %s81
      %p85 = pneg %p79
      %p86 = scmp.eq.s32.totalorder %s9, 5
      %p87 = por %p85, %p86
      %p88 = scmp.ne.s32.totalorder %s80, %s83
      %p89 = scmp.eq.s32.totalorder %s9, 0
      %p90 = por %p88, %p89
      %p91 = scmp.ne.s32.totalorder %s80, %s83
      %p92 = scmp.eq.s32.totalorder %s14, 5
      %p93 = por %p91, %p92
      %p94 = scmp.ne.s32.totalorder %s83, %s84
      %p95 = scmp.eq.s32.totalorder %s14, 0
      %p96 = por %p94, %p95
      %p97 = scmp.ne.s32.totalorder %s83, %s84
      %p98 = scmp.eq.s32.totalorder %s15, 5
      %p99 = por %p97, %p98
      %p101 = scmp.ne.s32.totalorder %s84, %s100
      %p102 = scmp.eq.s32.totalorder %s15, 0
      %p103 = por %p101, %p102
      %p104 = scmp.le.s32.totalorder 1, %s9
      %p105 = scmp.lt.s32.totalorder %s9, 7
      %p106 = pnand %p104, %p105
      %p107 = pneg %p106
      // Predicated region
      $region9: #{stft_mag.1} parent=5 // pred_check
        _
      $region10: #{stft_mag.1} parent=5 // pred_check_branch
        %109 = sbr.rel (%p106) target = $region12
      $region11: #{stft_mag.1} parent=5 // pred_region
        %s110 = ssub.s32 %s9, 1
        // Predicated region
        $region13: #{stft_mag.1} parent=11 // pred_check
          %p111 = pneg %p68
        $region14: #{stft_mag.1} parent=11 // pred_check_branch
          %113 = sbr.rel (%p111) target = $region16
        $region15: #{stft_mag.1} parent=11 // pred_region
          %s115 = ssub.s32 49152, 49152
          %116 = vsyncadd [#allocation3], %s115
          %s117 = sshll.u32 [#allocation2], 4
          %s118 = int_to_ptr.vmem [resolvable:$true] %s117
          %123 = dma.hbm_to_vmem [thread:$0]  %s1, 49152, %s118, [#allocation3], 768, 768, 48
        $region16: #{stft_mag.1} parent=11 // pred_fallthru
          _
      $region12: #{stft_mag.1} parent=5 // pred_fallthru
        _
      %p124 = scmp.lt.s32.totalorder %s9, 6
      // Predicated region
      $region17: #{stft_mag.1} parent=5 // pred_check
        %p125 = pneg %p124
      $region18: #{stft_mag.1} parent=5 // pred_check_branch
        %127 = sbr.rel (%p125) target = $region20
      $region19: #{stft_mag.1} parent=5 // pred_region
        // Predicated region
        $region21: #{stft_mag.1} parent=19 // pred_check
          %p128 = pneg %p41
        $region22: #{stft_mag.1} parent=19 // pred_check_branch
          %130 = sbr.rel (%p128) target = $region24
        $region23: #{stft_mag.1} parent=19 // pred_region
          %p131 = scmp.lt.s32.totalorder %s16, 1
          %s132 = scalar_select %p131, %s16, 1
          %s133 = smul.addr %s132, 4
          %s134 = smul.addr %s133, 8
          %s135 = scalar_lea.vmem %s0, %s134
        $region24: #{stft_mag.1} parent=19 // pred_fallthru
          _
      $region20: #{stft_mag.1} parent=5 // pred_fallthru
        _
      %p136 = scmp.le.s32.totalorder 1, %s9
      %p137 = scmp.lt.s32.totalorder %s9, 7
      %p138 = pnand %p136, %p137
      %p139 = pneg %p138
      // Predicated region
      $region25: #{stft_mag.1} parent=5 // pred_check
        _
      $region26: #{stft_mag.1} parent=5 // pred_check_branch
        %141 = sbr.rel (%p138) target = $region28
      $region27: #{stft_mag.1} parent=5 // pred_region
        %s142 = ssub.s32 %s9, 1
        // Predicated region
        $region29: #{stft_mag.1} parent=27 // pred_check
          %p143 = pneg %p68
        $region30: #{stft_mag.1} parent=27 // pred_check_branch
          %145 = sbr.rel (%p143) target = $region32
        $region31: #{stft_mag.1} parent=27 // pred_region
          %146 = dma.done [#allocation3], 49152
        $region32: #{stft_mag.1} parent=27 // pred_fallthru
          _
        %p147 = scmp.lt.s32.totalorder %s18, 1
        %s148 = scalar_select %p147, %s18, 1
        %s149 = smul.addr %s148, 4
        %s150 = smul.addr %s149, 8
        %s151 = scalar_lea.vmem %s0, %s150
        %p152 = pneg %p47
        %p153 = pneg %p44
        %p154 = pneg %p68
        %p155 = pneg %p65
        %p156 = pneg %p96
        %p157 = pneg %p93
        %p158 = scmp.lt.s32.totalorder %s18, 1
        %s159 = scalar_select %p158, %s18, 1
        %p160 = scmp.lt.s32.totalorder %s19, 2
        %s161 = scalar_select %p160, %s19, 2
        %s162 = smul.addr %s161, 3
        %s163 = smul.addr %s159, 9
        %s164 = sadd.s32 %s162, %s163
        %s165 = smul.addr %s164, 8
        %s166 = scalar_lea.vmem %s2, %s165
        %p167 = scmp.lt.s32.totalorder %s18, 1
        %s168 = scalar_select %p167, %s18, 1
        %s169 = smul.addr %s168, 4
        %s170 = smul.addr %s169, 8
        %s171 = scalar_lea.vmem %s0, %s170
        %p172 = scmp.lt.s32.totalorder %s18, 1
        %s173 = scalar_select %p172, %s18, 1
        %p174 = scmp.lt.s32.totalorder %s19, 2
        %s175 = scalar_select %p174, %s19, 2
        %s176 = smul.addr %s175, 3
        %s177 = smul.addr %s173, 9
        %s178 = sadd.s32 %s176, %s177
        %s179 = smul.addr %s178, 8
        %s180 = scalar_lea.vmem %s2, %s179
        %s181 = smul.u32 %s19, 8
        %s182 = scalar_lea.vmem %s171, %s181
        %v183 = vld [vmem:[%s182] sm:$0xff]
        %v184 = vld [vmem:[#allocation2] sm:$0xff]
        %v185 = vld [vmem:[#allocation2 + $0x8] sm:$0xff]
        %v186 = vld [vmem:[#allocation2 + $0x10] sm:$0xff]
        %v187 = vld [vmem:[#allocation2 + $0x18] sm:$0xff]
        %v188 = vld [vmem:[#allocation2 + $0x20] sm:$0xff]
        %v189 = vld [vmem:[#allocation2 + $0x28] sm:$0xff]
        %v190 = vld [vmem:[#allocation2 + $0x30] sm:$0xff]
        %v191 = vld [vmem:[#allocation2 + $0x38] sm:$0xff]
        %v192 = vld [vmem:[#allocation2 + $0x40] sm:$0xff]
        %v193 = vld [vmem:[#allocation2 + $0x48] sm:$0xff]
        %v194 = vld [vmem:[#allocation2 + $0x50] sm:$0xff]
        %v195 = vld [vmem:[#allocation2 + $0x58] sm:$0xff]
        %v196 = vld [vmem:[#allocation2 + $0x60] sm:$0xff]
        %v197 = vld [vmem:[#allocation2 + $0x68] sm:$0xff]
        %v198 = vld [vmem:[#allocation2 + $0x70] sm:$0xff]
        %v199 = vld [vmem:[#allocation2 + $0x78] sm:$0xff]
        %v200 = vld [vmem:[#allocation2 + $0x80] sm:$0xff]
        %v201 = vld [vmem:[#allocation2 + $0x88] sm:$0xff]
        %v202 = vld [vmem:[#allocation2 + $0x90] sm:$0xff]
        %v203 = vld [vmem:[#allocation2 + $0x98] sm:$0xff]
        %v204 = vld [vmem:[#allocation2 + $0xa0] sm:$0xff]
        %v205 = vld [vmem:[#allocation2 + $0xa8] sm:$0xff]
        %v206 = vld [vmem:[#allocation2 + $0xb0] sm:$0xff]
        %v207 = vld [vmem:[#allocation2 + $0xb8] sm:$0xff]
        %v208 = vld [vmem:[#allocation2 + $0xc0] sm:$0xff]
        %v209 = vld [vmem:[#allocation2 + $0xc8] sm:$0xff]
        %v210 = vld [vmem:[#allocation2 + $0xd0] sm:$0xff]
        %v211 = vld [vmem:[#allocation2 + $0xd8] sm:$0xff]
        %v212 = vld [vmem:[#allocation2 + $0xe0] sm:$0xff]
        %v213 = vld [vmem:[#allocation2 + $0xe8] sm:$0xff]
        %v214 = vld [vmem:[#allocation2 + $0xf0] sm:$0xff]
        %v215 = vld [vmem:[#allocation2 + $0xf8] sm:$0xff]
        %v216 = vld [vmem:[#allocation2 + $0x100] sm:$0xff]
        %v217 = vld [vmem:[#allocation2 + $0x108] sm:$0xff]
        %v218 = vld [vmem:[#allocation2 + $0x110] sm:$0xff]
        %v219 = vld [vmem:[#allocation2 + $0x118] sm:$0xff]
        %v220 = vld [vmem:[#allocation2 + $0x120] sm:$0xff]
        %v221 = vld [vmem:[#allocation2 + $0x128] sm:$0xff]
        %v222 = vld [vmem:[#allocation2 + $0x130] sm:$0xff]
        %v223 = vld [vmem:[#allocation2 + $0x138] sm:$0xff]
        %v224 = vld [vmem:[#allocation2 + $0x140] sm:$0xff]
        %v225 = vld [vmem:[#allocation2 + $0x148] sm:$0xff]
        %v226 = vld [vmem:[#allocation2 + $0x150] sm:$0xff]
        %v227 = vld [vmem:[#allocation2 + $0x158] sm:$0xff]
        %v228 = vld [vmem:[#allocation2 + $0x160] sm:$0xff]
        %v229 = vld [vmem:[#allocation2 + $0x168] sm:$0xff]
        %v230 = vld [vmem:[#allocation2 + $0x170] sm:$0xff]
        %v231 = vld [vmem:[#allocation2 + $0x178] sm:$0xff]
        %v232 = vld [vmem:[#allocation2 + $0x180] sm:$0xff]
        %v233 = vld [vmem:[#allocation2 + $0x188] sm:$0xff]
        %v234 = vld [vmem:[#allocation2 + $0x190] sm:$0xff]
        %v235 = vld [vmem:[#allocation2 + $0x198] sm:$0xff]
        %v236 = vld [vmem:[#allocation2 + $0x1a0] sm:$0xff]
        %v237 = vld [vmem:[#allocation2 + $0x1a8] sm:$0xff]
        %v238 = vld [vmem:[#allocation2 + $0x1b0] sm:$0xff]
        %v239 = vld [vmem:[#allocation2 + $0x1b8] sm:$0xff]
        %v240 = vld [vmem:[#allocation2 + $0x1c0] sm:$0xff]
        %v241 = vld [vmem:[#allocation2 + $0x1c8] sm:$0xff]
        %v242 = vld [vmem:[#allocation2 + $0x1d0] sm:$0xff]
        %v243 = vld [vmem:[#allocation2 + $0x1d8] sm:$0xff]
        %v244 = vld [vmem:[#allocation2 + $0x1e0] sm:$0xff]
        %v245 = vld [vmem:[#allocation2 + $0x1e8] sm:$0xff]
        %v246 = vld [vmem:[#allocation2 + $0x1f0] sm:$0xff]
        %v247 = vld [vmem:[#allocation2 + $0x1f8] sm:$0xff]
        %v248 = vld [vmem:[#allocation2 + $0x200] sm:$0xff]
        %v249 = vld [vmem:[#allocation2 + $0x208] sm:$0xff]
        %v250 = vld [vmem:[#allocation2 + $0x210] sm:$0xff]
        %v251 = vld [vmem:[#allocation2 + $0x218] sm:$0xff]
        %v252 = vld [vmem:[#allocation2 + $0x220] sm:$0xff]
        %v253 = vld [vmem:[#allocation2 + $0x228] sm:$0xff]
        %v254 = vld [vmem:[#allocation2 + $0x230] sm:$0xff]
        %v255 = vld [vmem:[#allocation2 + $0x238] sm:$0xff]
        %v256 = vld [vmem:[#allocation2 + $0x240] sm:$0xff]
        %v257 = vld [vmem:[#allocation2 + $0x248] sm:$0xff]
        %v258 = vld [vmem:[#allocation2 + $0x250] sm:$0xff]
        %v259 = vld [vmem:[#allocation2 + $0x258] sm:$0xff]
        %v260 = vld [vmem:[#allocation2 + $0x260] sm:$0xff]
        %v261 = vld [vmem:[#allocation2 + $0x268] sm:$0xff]
        %v262 = vld [vmem:[#allocation2 + $0x270] sm:$0xff]
        %v263 = vld [vmem:[#allocation2 + $0x278] sm:$0xff]
        %v264 = vld [vmem:[#allocation2 + $0x280] sm:$0xff]
        %v265 = vld [vmem:[#allocation2 + $0x288] sm:$0xff]
        %v266 = vld [vmem:[#allocation2 + $0x290] sm:$0xff]
        %v267 = vld [vmem:[#allocation2 + $0x298] sm:$0xff]
        %v268 = vld [vmem:[#allocation2 + $0x2a0] sm:$0xff]
        %v269 = vld [vmem:[#allocation2 + $0x2a8] sm:$0xff]
        %v270 = vld [vmem:[#allocation2 + $0x2b0] sm:$0xff]
        %v271 = vld [vmem:[#allocation2 + $0x2b8] sm:$0xff]
        %v272 = vld [vmem:[#allocation2 + $0x2c0] sm:$0xff]
        %v273 = vld [vmem:[#allocation2 + $0x2c8] sm:$0xff]
        %v274 = vld [vmem:[#allocation2 + $0x2d0] sm:$0xff]
        %v275 = vld [vmem:[#allocation2 + $0x2d8] sm:$0xff]
        %v276 = vld [vmem:[#allocation2 + $0x2e0] sm:$0xff]
        %v277 = vld [vmem:[#allocation2 + $0x2e8] sm:$0xff]
        %v278 = vld [vmem:[#allocation2 + $0x2f0] sm:$0xff]
        %v279 = vld [vmem:[#allocation2 + $0x2f8] sm:$0xff]
        %s280 = sadd.s32 %s181, 1
        %s281 = scalar_lea.vmem %s171, %s280
        %v282 = vld [vmem:[%s281] sm:$0xff]
        %s283 = scalar_lea.vmem [#allocation2], 768
        %v284 = vld [vmem:[%s283] sm:$0xff]
        %v285 = vld [vmem:[%s283 + $0x8] sm:$0xff]
        %v286 = vld [vmem:[%s283 + $0x10] sm:$0xff]
        %v287 = vld [vmem:[%s283 + $0x18] sm:$0xff]
        %v288 = vld [vmem:[%s283 + $0x20] sm:$0xff]
        %v289 = vld [vmem:[%s283 + $0x28] sm:$0xff]
        %v290 = vld [vmem:[%s283 + $0x30] sm:$0xff]
        %v291 = vld [vmem:[%s283 + $0x38] sm:$0xff]
        %v292 = vld [vmem:[%s283 + $0x40] sm:$0xff]
        %v293 = vld [vmem:[%s283 + $0x48] sm:$0xff]
        %v294 = vld [vmem:[%s283 + $0x50] sm:$0xff]
        %v295 = vld [vmem:[%s283 + $0x58] sm:$0xff]
        %v296 = vld [vmem:[%s283 + $0x60] sm:$0xff]
        %v297 = vld [vmem:[%s283 + $0x68] sm:$0xff]
        %v298 = vld [vmem:[%s283 + $0x70] sm:$0xff]
        %v299 = vld [vmem:[%s283 + $0x78] sm:$0xff]
        %v300 = vld [vmem:[%s283 + $0x80] sm:$0xff]
        %v301 = vld [vmem:[%s283 + $0x88] sm:$0xff]
        %v302 = vld [vmem:[%s283 + $0x90] sm:$0xff]
        %v303 = vld [vmem:[%s283 + $0x98] sm:$0xff]
        %v304 = vld [vmem:[%s283 + $0xa0] sm:$0xff]
        %v305 = vld [vmem:[%s283 + $0xa8] sm:$0xff]
        %v306 = vld [vmem:[%s283 + $0xb0] sm:$0xff]
        %v307 = vld [vmem:[%s283 + $0xb8] sm:$0xff]
        %v308 = vld [vmem:[%s283 + $0xc0] sm:$0xff]
        %v309 = vld [vmem:[%s283 + $0xc8] sm:$0xff]
        %v310 = vld [vmem:[%s283 + $0xd0] sm:$0xff]
        %v311 = vld [vmem:[%s283 + $0xd8] sm:$0xff]
        %v312 = vld [vmem:[%s283 + $0xe0] sm:$0xff]
        %v313 = vld [vmem:[%s283 + $0xe8] sm:$0xff]
        %v314 = vld [vmem:[%s283 + $0xf0] sm:$0xff]
        %v315 = vld [vmem:[%s283 + $0xf8] sm:$0xff]
        %v316 = vld [vmem:[%s283 + $0x100] sm:$0xff]
        %v317 = vld [vmem:[%s283 + $0x108] sm:$0xff]
        %v318 = vld [vmem:[%s283 + $0x110] sm:$0xff]
        %v319 = vld [vmem:[%s283 + $0x118] sm:$0xff]
        %v320 = vld [vmem:[%s283 + $0x120] sm:$0xff]
        %v321 = vld [vmem:[%s283 + $0x128] sm:$0xff]
        %v322 = vld [vmem:[%s283 + $0x130] sm:$0xff]
        %v323 = vld [vmem:[%s283 + $0x138] sm:$0xff]
        %v324 = vld [vmem:[%s283 + $0x140] sm:$0xff]
        %v325 = vld [vmem:[%s283 + $0x148] sm:$0xff]
        %v326 = vld [vmem:[%s283 + $0x150] sm:$0xff]
        %v327 = vld [vmem:[%s283 + $0x158] sm:$0xff]
        %v328 = vld [vmem:[%s283 + $0x160] sm:$0xff]
        %v329 = vld [vmem:[%s283 + $0x168] sm:$0xff]
        %v330 = vld [vmem:[%s283 + $0x170] sm:$0xff]
        %v331 = vld [vmem:[%s283 + $0x178] sm:$0xff]
        %v332 = vld [vmem:[%s283 + $0x180] sm:$0xff]
        %v333 = vld [vmem:[%s283 + $0x188] sm:$0xff]
        %v334 = vld [vmem:[%s283 + $0x190] sm:$0xff]
        %v335 = vld [vmem:[%s283 + $0x198] sm:$0xff]
        %v336 = vld [vmem:[%s283 + $0x1a0] sm:$0xff]
        %v337 = vld [vmem:[%s283 + $0x1a8] sm:$0xff]
        %v338 = vld [vmem:[%s283 + $0x1b0] sm:$0xff]
        %v339 = vld [vmem:[%s283 + $0x1b8] sm:$0xff]
        %v340 = vld [vmem:[%s283 + $0x1c0] sm:$0xff]
        %v341 = vld [vmem:[%s283 + $0x1c8] sm:$0xff]
        %v342 = vld [vmem:[%s283 + $0x1d0] sm:$0xff]
        %v343 = vld [vmem:[%s283 + $0x1d8] sm:$0xff]
        %v344 = vld [vmem:[%s283 + $0x1e0] sm:$0xff]
        %v345 = vld [vmem:[%s283 + $0x1e8] sm:$0xff]
        %v346 = vld [vmem:[%s283 + $0x1f0] sm:$0xff]
        %v347 = vld [vmem:[%s283 + $0x1f8] sm:$0xff]
        %v348 = vld [vmem:[%s283 + $0x200] sm:$0xff]
        %v349 = vld [vmem:[%s283 + $0x208] sm:$0xff]
        %v350 = vld [vmem:[%s283 + $0x210] sm:$0xff]
        %v351 = vld [vmem:[%s283 + $0x218] sm:$0xff]
        %v352 = vld [vmem:[%s283 + $0x220] sm:$0xff]
        %v353 = vld [vmem:[%s283 + $0x228] sm:$0xff]
        %v354 = vld [vmem:[%s283 + $0x230] sm:$0xff]
        %v355 = vld [vmem:[%s283 + $0x238] sm:$0xff]
        %v356 = vld [vmem:[%s283 + $0x240] sm:$0xff]
        %v357 = vld [vmem:[%s283 + $0x248] sm:$0xff]
        %v358 = vld [vmem:[%s283 + $0x250] sm:$0xff]
        %v359 = vld [vmem:[%s283 + $0x258] sm:$0xff]
        %v360 = vld [vmem:[%s283 + $0x260] sm:$0xff]
        %v361 = vld [vmem:[%s283 + $0x268] sm:$0xff]
        %v362 = vld [vmem:[%s283 + $0x270] sm:$0xff]
        %v363 = vld [vmem:[%s283 + $0x278] sm:$0xff]
        %v364 = vld [vmem:[%s283 + $0x280] sm:$0xff]
        %v365 = vld [vmem:[%s283 + $0x288] sm:$0xff]
        %v366 = vld [vmem:[%s283 + $0x290] sm:$0xff]
        %v367 = vld [vmem:[%s283 + $0x298] sm:$0xff]
        %v368 = vld [vmem:[%s283 + $0x2a0] sm:$0xff]
        %v369 = vld [vmem:[%s283 + $0x2a8] sm:$0xff]
        %v370 = vld [vmem:[%s283 + $0x2b0] sm:$0xff]
        %v371 = vld [vmem:[%s283 + $0x2b8] sm:$0xff]
        %v372 = vld [vmem:[%s283 + $0x2c0] sm:$0xff]
        %v373 = vld [vmem:[%s283 + $0x2c8] sm:$0xff]
        %v374 = vld [vmem:[%s283 + $0x2d0] sm:$0xff]
        %v375 = vld [vmem:[%s283 + $0x2d8] sm:$0xff]
        %v376 = vld [vmem:[%s283 + $0x2e0] sm:$0xff]
        %v377 = vld [vmem:[%s283 + $0x2e8] sm:$0xff]
        %v378 = vld [vmem:[%s283 + $0x2f0] sm:$0xff]
        %v379 = vld [vmem:[%s283 + $0x2f8] sm:$0xff]
        %380 = vmatprep.subr.mxu0 %v285
        %381 = vmatpush1.msra.mxu0 %v284
        %382 = vmatprep.subr.mxu0 %v291
        %383 = vmatpush1.msra.mxu0 %v290
        %384 = vmatprep.subr.mxu0 %v297
        %385 = vmatpush1.msra.mxu0 %v296
        %386 = vmatprep.subr.mxu0 %v303
        %387 = vmatpush1.msra.mxu0 %v302
        %388 = vmatprep.subr.mxu0 %v309
        %389 = vmatpush1.msra.mxu0 %v308
        %390 = vmatprep.subr.mxu0 %v315
        %391 = vmatpush1.msra.mxu0 %v314
        %392 = vmatprep.subr.mxu0 %v321
        %393 = vmatpush1.msra.mxu0 %v320
        %394 = vmatprep.subr.mxu0 %v327
        %395 = vmatpush1.msra.mxu0 %v326
        %396 = vmatprep.subr.mxu0 %v333
        %397 = vmatpush1.msra.mxu0 %v332
        %398 = vmatprep.subr.mxu0 %v339
        %399 = vmatpush1.msra.mxu0 %v338
        %400 = vmatprep.subr.mxu0 %v345
        %401 = vmatpush1.msra.mxu0 %v344
        %402 = vmatprep.subr.mxu0 %v351
        %403 = vmatpush1.msra.mxu0 %v350
        %404 = vmatprep.subr.mxu0 %v357
        %405 = vmatpush1.msra.mxu0 %v356
        %406 = vmatprep.subr.mxu0 %v363
        %407 = vmatpush1.msra.mxu0 %v362
        %408 = vmatprep.subr.mxu0 %v369
        %409 = vmatpush1.msra.mxu0 %v368
        %410 = vmatprep.subr.mxu0 %v375
        %411 = vmatpush1.msra.mxu0 %v374
        %412 = vmatprep.subr.mxu0 0.0
        %413 = vmatpush1.msra.mxu0 0.0
        %414 = vmatprep.subr.mxu0 0.0
        %415 = vmatpush1.msra.mxu0 0.0
        %416 = vmatprep.subr.mxu0 0.0
        %417 = vmatpush1.msra.mxu0 0.0
        %418 = vmatprep.subr.mxu0 0.0
        %419 = vmatpush1.msra.mxu0 0.0
        %420 = vmatprep.subr.mxu0 0.0
        %421 = vmatpush1.msra.mxu0 0.0
        %422 = vmatprep.subr.mxu0 0.0
        %423 = vmatpush1.msra.mxu0 0.0
        %424 = vmatprep.subr.mxu0 0.0
        %425 = vmatpush1.msra.mxu0 0.0
        %426 = vmatprep.subr.mxu0 0.0
        %427 = vmatpush1.msra.mxu0 0.0
        %428 = vmatprep.subr.mxu0 0.0
        %429 = vmatpush1.msra.mxu0 0.0
        %430 = vmatprep.subr.mxu0 0.0
        %431 = vmatpush1.msra.mxu0 0.0
        %432 = vmatprep.subr.mxu0 0.0
        %433 = vmatpush1.msra.mxu0 0.0
        %434 = vmatprep.subr.mxu0 0.0
        %435 = vmatpush1.msra.mxu0 0.0
        %436 = vmatprep.subr.mxu0 0.0
        %437 = vmatpush1.msra.mxu0 0.0
        %438 = vmatprep.subr.mxu0 0.0
        %439 = vmatpush1.msra.mxu0 0.0
        %440 = vmatprep.subr.mxu0 0.0
        %441 = vmatpush1.msra.mxu0 0.0
        %442 = vmatprep.subr.mxu0 0.0
        %443 = vmatpush1.msra.mxu0 0.0
        %444 = vmatprep.mubr.f32.mxu0 0.0
        %445 = vmatmul.mubr.f32.gmra.mrb[0].mxu0 %v282
        %v446 = vpop.f32.mrb[0].mxu0
        %v447 = vadd.f32 0.0, %v446
        %v448 = vpop.f32.mrb[0].mxu0
        %v449 = vadd.f32 0.0, %v448
        %450 = vdwg.mxu0
        %451 = vmatprep.subr.mxu0 %v287
        %452 = vmatpush1.msra.mxu0 %v286
        %453 = vmatprep.subr.mxu0 %v293
        %454 = vmatpush1.msra.mxu0 %v292
        %455 = vmatprep.subr.mxu0 %v299
        %456 = vmatpush1.msra.mxu0 %v298
        %457 = vmatprep.subr.mxu0 %v305
        %458 = vmatpush1.msra.mxu0 %v304
        %459 = vmatprep.subr.mxu0 %v311
        %460 = vmatpush1.msra.mxu0 %v310
        %461 = vmatprep.subr.mxu0 %v317
        %462 = vmatpush1.msra.mxu0 %v316
        %463 = vmatprep.subr.mxu0 %v323
        %464 = vmatpush1.msra.mxu0 %v322
        %465 = vmatprep.subr.mxu0 %v329
        %466 = vmatpush1.msra.mxu0 %v328
        %467 = vmatprep.subr.mxu0 %v335
        %468 = vmatpush1.msra.mxu0 %v334
        %469 = vmatprep.subr.mxu0 %v341
        %470 = vmatpush1.msra.mxu0 %v340
        %471 = vmatprep.subr.mxu0 %v347
        %472 = vmatpush1.msra.mxu0 %v346
        %473 = vmatprep.subr.mxu0 %v353
        %474 = vmatpush1.msra.mxu0 %v352
        %475 = vmatprep.subr.mxu0 %v359
        %476 = vmatpush1.msra.mxu0 %v358
        %477 = vmatprep.subr.mxu0 %v365
        %478 = vmatpush1.msra.mxu0 %v364
        %479 = vmatprep.subr.mxu0 %v371
        %480 = vmatpush1.msra.mxu0 %v370
        %481 = vmatprep.subr.mxu0 %v377
        %482 = vmatpush1.msra.mxu0 %v376
        %483 = vmatprep.subr.mxu0 0.0
        %484 = vmatpush1.msra.mxu0 0.0
        %485 = vmatprep.subr.mxu0 0.0
        %486 = vmatpush1.msra.mxu0 0.0
        %487 = vmatprep.subr.mxu0 0.0
        %488 = vmatpush1.msra.mxu0 0.0
        %489 = vmatprep.subr.mxu0 0.0
        %490 = vmatpush1.msra.mxu0 0.0
        %491 = vmatprep.subr.mxu0 0.0
        %492 = vmatpush1.msra.mxu0 0.0
        %493 = vmatprep.subr.mxu0 0.0
        %494 = vmatpush1.msra.mxu0 0.0
        %495 = vmatprep.subr.mxu0 0.0
        %496 = vmatpush1.msra.mxu0 0.0
        %497 = vmatprep.subr.mxu0 0.0
        %498 = vmatpush1.msra.mxu0 0.0
        %499 = vmatprep.subr.mxu0 0.0
        %500 = vmatpush1.msra.mxu0 0.0
        %501 = vmatprep.subr.mxu0 0.0
        %502 = vmatpush1.msra.mxu0 0.0
        %503 = vmatprep.subr.mxu0 0.0
        %504 = vmatpush1.msra.mxu0 0.0
        %505 = vmatprep.subr.mxu0 0.0
        %506 = vmatpush1.msra.mxu0 0.0
        %507 = vmatprep.subr.mxu0 0.0
        %508 = vmatpush1.msra.mxu0 0.0
        %509 = vmatprep.subr.mxu0 0.0
        %510 = vmatpush1.msra.mxu0 0.0
        %511 = vmatprep.subr.mxu0 0.0
        %512 = vmatpush1.msra.mxu0 0.0
        %513 = vmatprep.subr.mxu0 0.0
        %514 = vmatpush1.msra.mxu0 0.0
        %515 = vmatprep.mubr.f32.mxu0 0.0
        %516 = vmatmul.mubr.f32.gmra.mrb[0].mxu0 %v282
        %v517 = vpop.f32.mrb[0].mxu0
        %v518 = vadd.f32 0.0, %v517
        %v519 = vpop.f32.mrb[0].mxu0
        %v520 = vadd.f32 0.0, %v519
        %521 = vdwg.mxu0
        %522 = vmatprep.subr.mxu0 %v289
        %523 = vmatpush1.msra.mxu0 %v288
        %524 = vmatprep.subr.mxu0 %v295
        %525 = vmatpush1.msra.mxu0 %v294
        %526 = vmatprep.subr.mxu0 %v301
        %527 = vmatpush1.msra.mxu0 %v300
        %528 = vmatprep.subr.mxu0 %v307
        %529 = vmatpush1.msra.mxu0 %v306
        %530 = vmatprep.subr.mxu0 %v313
        %531 = vmatpush1.msra.mxu0 %v312
        %532 = vmatprep.subr.mxu0 %v319
        %533 = vmatpush1.msra.mxu0 %v318
        %534 = vmatprep.subr.mxu0 %v325
        %535 = vmatpush1.msra.mxu0 %v324
        %536 = vmatprep.subr.mxu0 %v331
        %537 = vmatpush1.msra.mxu0 %v330
        %538 = vmatprep.subr.mxu0 %v337
        %539 = vmatpush1.msra.mxu0 %v336
        %540 = vmatprep.subr.mxu0 %v343
        %541 = vmatpush1.msra.mxu0 %v342
        %542 = vmatprep.subr.mxu0 %v349
        %543 = vmatpush1.msra.mxu0 %v348
        %544 = vmatprep.subr.mxu0 %v355
        %545 = vmatpush1.msra.mxu0 %v354
        %546 = vmatprep.subr.mxu0 %v361
        %547 = vmatpush1.msra.mxu0 %v360
        %548 = vmatprep.subr.mxu0 %v367
        %549 = vmatpush1.msra.mxu0 %v366
        %550 = vmatprep.subr.mxu0 %v373
        %551 = vmatpush1.msra.mxu0 %v372
        %552 = vmatprep.subr.mxu0 %v379
        %553 = vmatpush1.msra.mxu0 %v378
        %554 = vmatprep.subr.mxu0 0.0
        %555 = vmatpush1.msra.mxu0 0.0
        %556 = vmatprep.subr.mxu0 0.0
        %557 = vmatpush1.msra.mxu0 0.0
        %558 = vmatprep.subr.mxu0 0.0
        %559 = vmatpush1.msra.mxu0 0.0
        %560 = vmatprep.subr.mxu0 0.0
        %561 = vmatpush1.msra.mxu0 0.0
        %562 = vmatprep.subr.mxu0 0.0
        %563 = vmatpush1.msra.mxu0 0.0
        %564 = vmatprep.subr.mxu0 0.0
        %565 = vmatpush1.msra.mxu0 0.0
        %566 = vmatprep.subr.mxu0 0.0
        %567 = vmatpush1.msra.mxu0 0.0
        %568 = vmatprep.subr.mxu0 0.0
        %569 = vmatpush1.msra.mxu0 0.0
        %570 = vmatprep.subr.mxu0 0.0
        %571 = vmatpush1.msra.mxu0 0.0
        %572 = vmatprep.subr.mxu0 0.0
        %573 = vmatpush1.msra.mxu0 0.0
        %574 = vmatprep.subr.mxu0 0.0
        %575 = vmatpush1.msra.mxu0 0.0
        %576 = vmatprep.subr.mxu0 0.0
        %577 = vmatpush1.msra.mxu0 0.0
        %578 = vmatprep.subr.mxu0 0.0
        %579 = vmatpush1.msra.mxu0 0.0
        %580 = vmatprep.subr.mxu0 0.0
        %581 = vmatpush1.msra.mxu0 0.0
        %582 = vmatprep.subr.mxu0 0.0
        %583 = vmatpush1.msra.mxu0 0.0
        %584 = vmatprep.subr.mxu0 0.0
        %585 = vmatpush1.msra.mxu0 0.0
        %586 = vmatprep.mubr.f32.mxu0 0.0
        %587 = vmatmul.mubr.f32.gmra.mrb[0].mxu0 %v282
        %v588 = vpop.f32.mrb[0].mxu0
        %v589 = vadd.f32 0.0, %v588
        %v590 = vpop.f32.mrb[0].mxu0
        %v591 = vadd.f32 0.0, %v590
        %592 = vdwg.mxu0
        %593 = vmatprep.subr.mxu0 %v185
        %594 = vmatpush1.msra.mxu0 %v184
        %595 = vmatprep.subr.mxu0 %v191
        %596 = vmatpush1.msra.mxu0 %v190
        %597 = vmatprep.subr.mxu0 %v197
        %598 = vmatpush1.msra.mxu0 %v196
        %599 = vmatprep.subr.mxu0 %v203
        %600 = vmatpush1.msra.mxu0 %v202
        %601 = vmatprep.subr.mxu0 %v209
        %602 = vmatpush1.msra.mxu0 %v208
        %603 = vmatprep.subr.mxu0 %v215
        %604 = vmatpush1.msra.mxu0 %v214
        %605 = vmatprep.subr.mxu0 %v221
        %606 = vmatpush1.msra.mxu0 %v220
        %607 = vmatprep.subr.mxu0 %v227
        %608 = vmatpush1.msra.mxu0 %v226
        %609 = vmatprep.subr.mxu0 %v233
        %610 = vmatpush1.msra.mxu0 %v232
        %611 = vmatprep.subr.mxu0 %v239
        %612 = vmatpush1.msra.mxu0 %v238
        %613 = vmatprep.subr.mxu0 %v245
        %614 = vmatpush1.msra.mxu0 %v244
        %615 = vmatprep.subr.mxu0 %v251
        %616 = vmatpush1.msra.mxu0 %v250
        %617 = vmatprep.subr.mxu0 %v257
        %618 = vmatpush1.msra.mxu0 %v256
        %619 = vmatprep.subr.mxu0 %v263
        %620 = vmatpush1.msra.mxu0 %v262
        %621 = vmatprep.subr.mxu0 %v269
        %622 = vmatpush1.msra.mxu0 %v268
        %623 = vmatprep.subr.mxu0 %v275
        %624 = vmatpush1.msra.mxu0 %v274
        %625 = vmatprep.subr.mxu0 0.0
        %626 = vmatpush1.msra.mxu0 0.0
        %627 = vmatprep.subr.mxu0 0.0
        %628 = vmatpush1.msra.mxu0 0.0
        %629 = vmatprep.subr.mxu0 0.0
        %630 = vmatpush1.msra.mxu0 0.0
        %631 = vmatprep.subr.mxu0 0.0
        %632 = vmatpush1.msra.mxu0 0.0
        %633 = vmatprep.subr.mxu0 0.0
        %634 = vmatpush1.msra.mxu0 0.0
        %635 = vmatprep.subr.mxu0 0.0
        %636 = vmatpush1.msra.mxu0 0.0
        %637 = vmatprep.subr.mxu0 0.0
        %638 = vmatpush1.msra.mxu0 0.0
        %639 = vmatprep.subr.mxu0 0.0
        %640 = vmatpush1.msra.mxu0 0.0
        %641 = vmatprep.subr.mxu0 0.0
        %642 = vmatpush1.msra.mxu0 0.0
        %643 = vmatprep.subr.mxu0 0.0
        %644 = vmatpush1.msra.mxu0 0.0
        %645 = vmatprep.subr.mxu0 0.0
        %646 = vmatpush1.msra.mxu0 0.0
        %647 = vmatprep.subr.mxu0 0.0
        %648 = vmatpush1.msra.mxu0 0.0
        %649 = vmatprep.subr.mxu0 0.0
        %650 = vmatpush1.msra.mxu0 0.0
        %651 = vmatprep.subr.mxu0 0.0
        %652 = vmatpush1.msra.mxu0 0.0
        %653 = vmatprep.subr.mxu0 0.0
        %654 = vmatpush1.msra.mxu0 0.0
        %655 = vmatprep.subr.mxu0 0.0
        %656 = vmatpush1.msra.mxu0 0.0
        %657 = vmatprep.mubr.f32.mxu0 0.0
        %658 = vmatmul.mubr.f32.gmra.mrb[0].mxu0 %v183
        %v659 = vpop.f32.mrb[0].mxu0
        %v660 = vadd.f32 %v447, %v659
        %v661 = vpop.f32.mrb[0].mxu0
        %v662 = vadd.f32 %v449, %v661
        %663 = vdwg.mxu0
        %664 = vmatprep.subr.mxu0 %v187
        %665 = vmatpush1.msra.mxu0 %v186
        %666 = vmatprep.subr.mxu0 %v193
        %667 = vmatpush1.msra.mxu0 %v192
        %668 = vmatprep.subr.mxu0 %v199
        %669 = vmatpush1.msra.mxu0 %v198
        %670 = vmatprep.subr.mxu0 %v205
        %671 = vmatpush1.msra.mxu0 %v204
        %672 = vmatprep.subr.mxu0 %v211
        %673 = vmatpush1.msra.mxu0 %v210
        %674 = vmatprep.subr.mxu0 %v217
        %675 = vmatpush1.msra.mxu0 %v216
        %676 = vmatprep.subr.mxu0 %v223
        %677 = vmatpush1.msra.mxu0 %v222
        %678 = vmatprep.subr.mxu0 %v229
        %679 = vmatpush1.msra.mxu0 %v228
        %680 = vmatprep.subr.mxu0 %v235
        %681 = vmatpush1.msra.mxu0 %v234
        %682 = vmatprep.subr.mxu0 %v241
        %683 = vmatpush1.msra.mxu0 %v240
        %684 = vmatprep.subr.mxu0 %v247
        %685 = vmatpush1.msra.mxu0 %v246
        %686 = vmatprep.subr.mxu0 %v253
        %687 = vmatpush1.msra.mxu0 %v252
        %688 = vmatprep.subr.mxu0 %v259
        %689 = vmatpush1.msra.mxu0 %v258
        %690 = vmatprep.subr.mxu0 %v265
        %691 = vmatpush1.msra.mxu0 %v264
        %692 = vmatprep.subr.mxu0 %v271
        %693 = vmatpush1.msra.mxu0 %v270
        %694 = vmatprep.subr.mxu0 %v277
        %695 = vmatpush1.msra.mxu0 %v276
        %696 = vmatprep.subr.mxu0 0.0
        %697 = vmatpush1.msra.mxu0 0.0
        %698 = vmatprep.subr.mxu0 0.0
        %699 = vmatpush1.msra.mxu0 0.0
        %700 = vmatprep.subr.mxu0 0.0
        %701 = vmatpush1.msra.mxu0 0.0
        %702 = vmatprep.subr.mxu0 0.0
        %703 = vmatpush1.msra.mxu0 0.0
        %704 = vmatprep.subr.mxu0 0.0
        %705 = vmatpush1.msra.mxu0 0.0
        %706 = vmatprep.subr.mxu0 0.0
        %707 = vmatpush1.msra.mxu0 0.0
        %708 = vmatprep.subr.mxu0 0.0
        %709 = vmatpush1.msra.mxu0 0.0
        %710 = vmatprep.subr.mxu0 0.0
        %711 = vmatpush1.msra.mxu0 0.0
        %712 = vmatprep.subr.mxu0 0.0
        %713 = vmatpush1.msra.mxu0 0.0
        %714 = vmatprep.subr.mxu0 0.0
        %715 = vmatpush1.msra.mxu0 0.0
        %716 = vmatprep.subr.mxu0 0.0
        %717 = vmatpush1.msra.mxu0 0.0
        %718 = vmatprep.subr.mxu0 0.0
        %719 = vmatpush1.msra.mxu0 0.0
        %720 = vmatprep.subr.mxu0 0.0
        %721 = vmatpush1.msra.mxu0 0.0
        %722 = vmatprep.subr.mxu0 0.0
        %723 = vmatpush1.msra.mxu0 0.0
        %724 = vmatprep.subr.mxu0 0.0
        %725 = vmatpush1.msra.mxu0 0.0
        %726 = vmatprep.subr.mxu0 0.0
        %727 = vmatpush1.msra.mxu0 0.0
        %728 = vmatprep.mubr.f32.mxu0 0.0
        %729 = vmatmul.mubr.f32.gmra.mrb[0].mxu0 %v183
        %v730 = vpop.f32.mrb[0].mxu0
        %v731 = vadd.f32 %v518, %v730
        %v732 = vpop.f32.mrb[0].mxu0
        %v733 = vadd.f32 %v520, %v732
        %734 = vdwg.mxu0
        %735 = vmatprep.subr.mxu0 %v189
        %736 = vmatpush1.msra.mxu0 %v188
        %737 = vmatprep.subr.mxu0 %v195
        %738 = vmatpush1.msra.mxu0 %v194
        %739 = vmatprep.subr.mxu0 %v201
        %740 = vmatpush1.msra.mxu0 %v200
        %741 = vmatprep.subr.mxu0 %v207
        %742 = vmatpush1.msra.mxu0 %v206
        %743 = vmatprep.subr.mxu0 %v213
        %744 = vmatpush1.msra.mxu0 %v212
        %745 = vmatprep.subr.mxu0 %v219
        %746 = vmatpush1.msra.mxu0 %v218
        %747 = vmatprep.subr.mxu0 %v225
        %748 = vmatpush1.msra.mxu0 %v224
        %749 = vmatprep.subr.mxu0 %v231
        %750 = vmatpush1.msra.mxu0 %v230
        %751 = vmatprep.subr.mxu0 %v237
        %752 = vmatpush1.msra.mxu0 %v236
        %753 = vmatprep.subr.mxu0 %v243
        %754 = vmatpush1.msra.mxu0 %v242
        %755 = vmatprep.subr.mxu0 %v249
        %756 = vmatpush1.msra.mxu0 %v248
        %757 = vmatprep.subr.mxu0 %v255
        %758 = vmatpush1.msra.mxu0 %v254
        %759 = vmatprep.subr.mxu0 %v261
        %760 = vmatpush1.msra.mxu0 %v260
        %761 = vmatprep.subr.mxu0 %v267
        %762 = vmatpush1.msra.mxu0 %v266
        %763 = vmatprep.subr.mxu0 %v273
        %764 = vmatpush1.msra.mxu0 %v272
        %765 = vmatprep.subr.mxu0 %v279
        %766 = vmatpush1.msra.mxu0 %v278
        %767 = vmatprep.subr.mxu0 0.0
        %768 = vmatpush1.msra.mxu0 0.0
        %769 = vmatprep.subr.mxu0 0.0
        %770 = vmatpush1.msra.mxu0 0.0
        %771 = vmatprep.subr.mxu0 0.0
        %772 = vmatpush1.msra.mxu0 0.0
        %773 = vmatprep.subr.mxu0 0.0
        %774 = vmatpush1.msra.mxu0 0.0
        %775 = vmatprep.subr.mxu0 0.0
        %776 = vmatpush1.msra.mxu0 0.0
        %777 = vmatprep.subr.mxu0 0.0
        %778 = vmatpush1.msra.mxu0 0.0
        %779 = vmatprep.subr.mxu0 0.0
        %780 = vmatpush1.msra.mxu0 0.0
        %781 = vmatprep.subr.mxu0 0.0
        %782 = vmatpush1.msra.mxu0 0.0
        %783 = vmatprep.subr.mxu0 0.0
        %784 = vmatpush1.msra.mxu0 0.0
        %785 = vmatprep.subr.mxu0 0.0
        %786 = vmatpush1.msra.mxu0 0.0
        %787 = vmatprep.subr.mxu0 0.0
        %788 = vmatpush1.msra.mxu0 0.0
        %789 = vmatprep.subr.mxu0 0.0
        %790 = vmatpush1.msra.mxu0 0.0
        %791 = vmatprep.subr.mxu0 0.0
        %792 = vmatpush1.msra.mxu0 0.0
        %793 = vmatprep.subr.mxu0 0.0
        %794 = vmatpush1.msra.mxu0 0.0
        %795 = vmatprep.subr.mxu0 0.0
        %796 = vmatpush1.msra.mxu0 0.0
        %797 = vmatprep.subr.mxu0 0.0
        %798 = vmatpush1.msra.mxu0 0.0
        %799 = vmatprep.mubr.f32.mxu0 0.0
        %800 = vmatmul.mubr.f32.gmra.mrb[0].mxu0 %v183
        %v801 = vpop.f32.mrb[0].mxu0
        %v802 = vadd.f32 %v589, %v801
        %v803 = vpop.f32.mrb[0].mxu0
        %v804 = vadd.f32 %v591, %v803
        %805 = vdwg.mxu0
        %s806 = sadd.s32 %s181, 2
        %s807 = scalar_lea.vmem %s171, %s806
        %v808 = vld [vmem:[%s807] sm:$0xff]
        %s809 = scalar_lea.vmem [#allocation2], 1536
        %v810 = vld [vmem:[%s809] sm:$0xff]
        %v811 = vld [vmem:[%s809 + $0x8] sm:$0xff]
        %v812 = vld [vmem:[%s809 + $0x10] sm:$0xff]
        %v813 = vld [vmem:[%s809 + $0x18] sm:$0xff]
        %v814 = vld [vmem:[%s809 + $0x20] sm:$0xff]
        %v815 = vld [vmem:[%s809 + $0x28] sm:$0xff]
        %v816 = vld [vmem:[%s809 + $0x30] sm:$0xff]
        %v817 = vld [vmem:[%s809 + $0x38] sm:$0xff]
        %v818 = vld [vmem:[%s809 + $0x40] sm:$0xff]
        %v819 = vld [vmem:[%s809 + $0x48] sm:$0xff]
        %v820 = vld [vmem:[%s809 + $0x50] sm:$0xff]
        %v821 = vld [vmem:[%s809 + $0x58] sm:$0xff]
        %v822 = vld [vmem:[%s809 + $0x60] sm:$0xff]
        %v823 = vld [vmem:[%s809 + $0x68] sm:$0xff]
        %v824 = vld [vmem:[%s809 + $0x70] sm:$0xff]
        %v825 = vld [vmem:[%s809 + $0x78] sm:$0xff]
        %v826 = vld [vmem:[%s809 + $0x80] sm:$0xff]
        %v827 = vld [vmem:[%s809 + $0x88] sm:$0xff]
        %v828 = vld [vmem:[%s809 + $0x90] sm:$0xff]
        %v829 = vld [vmem:[%s809 + $0x98] sm:$0xff]
        %v830 = vld [vmem:[%s809 + $0xa0] sm:$0xff]
        %v831 = vld [vmem:[%s809 + $0xa8] sm:$0xff]
        %v832 = vld [vmem:[%s809 + $0xb0] sm:$0xff]
        %v833 = vld [vmem:[%s809 + $0xb8] sm:$0xff]
        %v834 = vld [vmem:[%s809 + $0xc0] sm:$0xff]
        %v835 = vld [vmem:[%s809 + $0xc8] sm:$0xff]
        %v836 = vld [vmem:[%s809 + $0xd0] sm:$0xff]
        %v837 = vld [vmem:[%s809 + $0xd8] sm:$0xff]
        %v838 = vld [vmem:[%s809 + $0xe0] sm:$0xff]
        %v839 = vld [vmem:[%s809 + $0xe8] sm:$0xff]
        %v840 = vld [vmem:[%s809 + $0xf0] sm:$0xff]
        %v841 = vld [vmem:[%s809 + $0xf8] sm:$0xff]
        %v842 = vld [vmem:[%s809 + $0x100] sm:$0xff]
        %v843 = vld [vmem:[%s809 + $0x108] sm:$0xff]
        %v844 = vld [vmem:[%s809 + $0x110] sm:$0xff]
        %v845 = vld [vmem:[%s809 + $0x118] sm:$0xff]
        %v846 = vld [vmem:[%s809 + $0x120] sm:$0xff]
        %v847 = vld [vmem:[%s809 + $0x128] sm:$0xff]
        %v848 = vld [vmem:[%s809 + $0x130] sm:$0xff]
        %v849 = vld [vmem:[%s809 + $0x138] sm:$0xff]
        %v850 = vld [vmem:[%s809 + $0x140] sm:$0xff]
        %v851 = vld [vmem:[%s809 + $0x148] sm:$0xff]
        %v852 = vld [vmem:[%s809 + $0x150] sm:$0xff]
        %v853 = vld [vmem:[%s809 + $0x158] sm:$0xff]
        %v854 = vld [vmem:[%s809 + $0x160] sm:$0xff]
        %v855 = vld [vmem:[%s809 + $0x168] sm:$0xff]
        %v856 = vld [vmem:[%s809 + $0x170] sm:$0xff]
        %v857 = vld [vmem:[%s809 + $0x178] sm:$0xff]
        %v858 = vld [vmem:[%s809 + $0x180] sm:$0xff]
        %v859 = vld [vmem:[%s809 + $0x188] sm:$0xff]
        %v860 = vld [vmem:[%s809 + $0x190] sm:$0xff]
        %v861 = vld [vmem:[%s809 + $0x198] sm:$0xff]
        %v862 = vld [vmem:[%s809 + $0x1a0] sm:$0xff]
        %v863 = vld [vmem:[%s809 + $0x1a8] sm:$0xff]
        %v864 = vld [vmem:[%s809 + $0x1b0] sm:$0xff]
        %v865 = vld [vmem:[%s809 + $0x1b8] sm:$0xff]
        %v866 = vld [vmem:[%s809 + $0x1c0] sm:$0xff]
        %v867 = vld [vmem:[%s809 + $0x1c8] sm:$0xff]
        %v868 = vld [vmem:[%s809 + $0x1d0] sm:$0xff]
        %v869 = vld [vmem:[%s809 + $0x1d8] sm:$0xff]
        %v870 = vld [vmem:[%s809 + $0x1e0] sm:$0xff]
        %v871 = vld [vmem:[%s809 + $0x1e8] sm:$0xff]
        %v872 = vld [vmem:[%s809 + $0x1f0] sm:$0xff]
        %v873 = vld [vmem:[%s809 + $0x1f8] sm:$0xff]
        %v874 = vld [vmem:[%s809 + $0x200] sm:$0xff]
        %v875 = vld [vmem:[%s809 + $0x208] sm:$0xff]
        %v876 = vld [vmem:[%s809 + $0x210] sm:$0xff]
        %v877 = vld [vmem:[%s809 + $0x218] sm:$0xff]
        %v878 = vld [vmem:[%s809 + $0x220] sm:$0xff]
        %v879 = vld [vmem:[%s809 + $0x228] sm:$0xff]
        %v880 = vld [vmem:[%s809 + $0x230] sm:$0xff]
        %v881 = vld [vmem:[%s809 + $0x238] sm:$0xff]
        %v882 = vld [vmem:[%s809 + $0x240] sm:$0xff]
        %v883 = vld [vmem:[%s809 + $0x248] sm:$0xff]
        %v884 = vld [vmem:[%s809 + $0x250] sm:$0xff]
        %v885 = vld [vmem:[%s809 + $0x258] sm:$0xff]
        %v886 = vld [vmem:[%s809 + $0x260] sm:$0xff]
        %v887 = vld [vmem:[%s809 + $0x268] sm:$0xff]
        %v888 = vld [vmem:[%s809 + $0x270] sm:$0xff]
        %v889 = vld [vmem:[%s809 + $0x278] sm:$0xff]
        %v890 = vld [vmem:[%s809 + $0x280] sm:$0xff]
        %v891 = vld [vmem:[%s809 + $0x288] sm:$0xff]
        %v892 = vld [vmem:[%s809 + $0x290] sm:$0xff]
        %v893 = vld [vmem:[%s809 + $0x298] sm:$0xff]
        %v894 = vld [vmem:[%s809 + $0x2a0] sm:$0xff]
        %v895 = vld [vmem:[%s809 + $0x2a8] sm:$0xff]
        %v896 = vld [vmem:[%s809 + $0x2b0] sm:$0xff]
        %v897 = vld [vmem:[%s809 + $0x2b8] sm:$0xff]
        %v898 = vld [vmem:[%s809 + $0x2c0] sm:$0xff]
        %v899 = vld [vmem:[%s809 + $0x2c8] sm:$0xff]
        %v900 = vld [vmem:[%s809 + $0x2d0] sm:$0xff]
        %v901 = vld [vmem:[%s809 + $0x2d8] sm:$0xff]
        %v902 = vld [vmem:[%s809 + $0x2e0] sm:$0xff]
        %v903 = vld [vmem:[%s809 + $0x2e8] sm:$0xff]
        %v904 = vld [vmem:[%s809 + $0x2f0] sm:$0xff]
        %v905 = vld [vmem:[%s809 + $0x2f8] sm:$0xff]
        %906 = vmatprep.subr.mxu0 %v811
        %907 = vmatpush1.msra.mxu0 %v810
        %908 = vmatprep.subr.mxu0 %v817
        %909 = vmatpush1.msra.mxu0 %v816
        %910 = vmatprep.subr.mxu0 %v823
        %911 = vmatpush1.msra.mxu0 %v822
        %912 = vmatprep.subr.mxu0 %v829
        %913 = vmatpush1.msra.mxu0 %v828
        %914 = vmatprep.subr.mxu0 %v835
        %915 = vmatpush1.msra.mxu0 %v834
        %916 = vmatprep.subr.mxu0 %v841
        %917 = vmatpush1.msra.mxu0 %v840
        %918 = vmatprep.subr.mxu0 %v847
        %919 = vmatpush1.msra.mxu0 %v846
        %920 = vmatprep.subr.mxu0 %v853
        %921 = vmatpush1.msra.mxu0 %v852
        %922 = vmatprep.subr.mxu0 %v859
        %923 = vmatpush1.msra.mxu0 %v858
        %924 = vmatprep.subr.mxu0 %v865
        %925 = vmatpush1.msra.mxu0 %v864
        %926 = vmatprep.subr.mxu0 %v871
        %927 = vmatpush1.msra.mxu0 %v870
        %928 = vmatprep.subr.mxu0 %v877
        %929 = vmatpush1.msra.mxu0 %v876
        %930 = vmatprep.subr.mxu0 %v883
        %931 = vmatpush1.msra.mxu0 %v882
        %932 = vmatprep.subr.mxu0 %v889
        %933 = vmatpush1.msra.mxu0 %v888
        %934 = vmatprep.subr.mxu0 %v895
        %935 = vmatpush1.msra.mxu0 %v894
        %936 = vmatprep.subr.mxu0 %v901
        %937 = vmatpush1.msra.mxu0 %v900
        %938 = vmatprep.subr.mxu0 0.0
        %939 = vmatpush1.msra.mxu0 0.0
        %940 = vmatprep.subr.mxu0 0.0
        %941 = vmatpush1.msra.mxu0 0.0
        %942 = vmatprep.subr.mxu0 0.0
        %943 = vmatpush1.msra.mxu0 0.0
        %944 = vmatprep.subr.mxu0 0.0
        %945 = vmatpush1.msra.mxu0 0.0
        %946 = vmatprep.subr.mxu0 0.0
        %947 = vmatpush1.msra.mxu0 0.0
        %948 = vmatprep.subr.mxu0 0.0
        %949 = vmatpush1.msra.mxu0 0.0
        %950 = vmatprep.subr.mxu0 0.0
        %951 = vmatpush1.msra.mxu0 0.0
        %952 = vmatprep.subr.mxu0 0.0
        %953 = vmatpush1.msra.mxu0 0.0
        %954 = vmatprep.subr.mxu0 0.0
        %955 = vmatpush1.msra.mxu0 0.0
        %956 = vmatprep.subr.mxu0 0.0
        %957 = vmatpush1.msra.mxu0 0.0
        %958 = vmatprep.subr.mxu0 0.0
        %959 = vmatpush1.msra.mxu0 0.0
        %960 = vmatprep.subr.mxu0 0.0
        %961 = vmatpush1.msra.mxu0 0.0
        %962 = vmatprep.subr.mxu0 0.0
        %963 = vmatpush1.msra.mxu0 0.0
        %964 = vmatprep.subr.mxu0 0.0
        %965 = vmatpush1.msra.mxu0 0.0
        %966 = vmatprep.subr.mxu0 0.0
        %967 = vmatpush1.msra.mxu0 0.0
        %968 = vmatprep.subr.mxu0 0.0
        %969 = vmatpush1.msra.mxu0 0.0
        %970 = vmatprep.mubr.f32.mxu0 0.0
        %971 = vmatmul.mubr.f32.gmra.mrb[0].mxu0 %v808
        %v972 = vpop.f32.mrb[0].mxu0
        %v973 = vadd.f32 0.0, %v972
        %v974 = vpop.f32.mrb[0].mxu0
        %v975 = vadd.f32 0.0, %v974
        %976 = vdwg.mxu0
        %977 = vmatprep.subr.mxu0 %v813
        %978 = vmatpush1.msra.mxu0 %v812
        %979 = vmatprep.subr.mxu0 %v819
        %980 = vmatpush1.msra.mxu0 %v818
        %981 = vmatprep.subr.mxu0 %v825
        %982 = vmatpush1.msra.mxu0 %v824
        %983 = vmatprep.subr.mxu0 %v831
        %984 = vmatpush1.msra.mxu0 %v830
        %985 = vmatprep.subr.mxu0 %v837
        %986 = vmatpush1.msra.mxu0 %v836
        %987 = vmatprep.subr.mxu0 %v843
        %988 = vmatpush1.msra.mxu0 %v842
        %989 = vmatprep.subr.mxu0 %v849
        %990 = vmatpush1.msra.mxu0 %v848
        %991 = vmatprep.subr.mxu0 %v855
        %992 = vmatpush1.msra.mxu0 %v854
        %993 = vmatprep.subr.mxu0 %v861
        %994 = vmatpush1.msra.mxu0 %v860
        %995 = vmatprep.subr.mxu0 %v867
        %996 = vmatpush1.msra.mxu0 %v866
        %997 = vmatprep.subr.mxu0 %v873
        %998 = vmatpush1.msra.mxu0 %v872
        %999 = vmatprep.subr.mxu0 %v879
        %1000 = vmatpush1.msra.mxu0 %v878
        %1001 = vmatprep.subr.mxu0 %v885
        %1002 = vmatpush1.msra.mxu0 %v884
        %1003 = vmatprep.subr.mxu0 %v891
        %1004 = vmatpush1.msra.mxu0 %v890
        %1005 = vmatprep.subr.mxu0 %v897
        %1006 = vmatpush1.msra.mxu0 %v896
        %1007 = vmatprep.subr.mxu0 %v903
        %1008 = vmatpush1.msra.mxu0 %v902
        %1009 = vmatprep.subr.mxu0 0.0
        %1010 = vmatpush1.msra.mxu0 0.0
        %1011 = vmatprep.subr.mxu0 0.0
        %1012 = vmatpush1.msra.mxu0 0.0
        %1013 = vmatprep.subr.mxu0 0.0
        %1014 = vmatpush1.msra.mxu0 0.0
        %1015 = vmatprep.subr.mxu0 0.0
        %1016 = vmatpush1.msra.mxu0 0.0
        %1017 = vmatprep.subr.mxu0 0.0
        %1018 = vmatpush1.msra.mxu0 0.0
        %1019 = vmatprep.subr.mxu0 0.0
        %1020 = vmatpush1.msra.mxu0 0.0
        %1021 = vmatprep.subr.mxu0 0.0
        %1022 = vmatpush1.msra.mxu0 0.0
        %1023 = vmatprep.subr.mxu0 0.0
        %1024 = vmatpush1.msra.mxu0 0.0
        %1025 = vmatprep.subr.mxu0 0.0
        %1026 = vmatpush1.msra.mxu0 0.0
        %1027 = vmatprep.subr.mxu0 0.0
        %1028 = vmatpush1.msra.mxu0 0.0
        %1029 = vmatprep.subr.mxu0 0.0
        %1030 = vmatpush1.msra.mxu0 0.0
        %1031 = vmatprep.subr.mxu0 0.0
        %1032 = vmatpush1.msra.mxu0 0.0
        %1033 = vmatprep.subr.mxu0 0.0
        %1034 = vmatpush1.msra.mxu0 0.0
        %1035 = vmatprep.subr.mxu0 0.0
        %1036 = vmatpush1.msra.mxu0 0.0
        %1037 = vmatprep.subr.mxu0 0.0
        %1038 = vmatpush1.msra.mxu0 0.0
        %1039 = vmatprep.subr.mxu0 0.0
        %1040 = vmatpush1.msra.mxu0 0.0
        %1041 = vmatprep.mubr.f32.mxu0 0.0
        %1042 = vmatmul.mubr.f32.gmra.mrb[0].mxu0 %v808
        %v1043 = vpop.f32.mrb[0].mxu0
        %v1044 = vadd.f32 0.0, %v1043
        %v1045 = vpop.f32.mrb[0].mxu0
        %v1046 = vadd.f32 0.0, %v1045
        %1047 = vdwg.mxu0
        %1048 = vmatprep.subr.mxu0 %v815
        %1049 = vmatpush1.msra.mxu0 %v814
        %1050 = vmatprep.subr.mxu0 %v821
        %1051 = vmatpush1.msra.mxu0 %v820
        %1052 = vmatprep.subr.mxu0 %v827
        %1053 = vmatpush1.msra.mxu0 %v826
        %1054 = vmatprep.subr.mxu0 %v833
        %1055 = vmatpush1.msra.mxu0 %v832
        %1056 = vmatprep.subr.mxu0 %v839
        %1057 = vmatpush1.msra.mxu0 %v838
        %1058 = vmatprep.subr.mxu0 %v845
        %1059 = vmatpush1.msra.mxu0 %v844
        %1060 = vmatprep.subr.mxu0 %v851
        %1061 = vmatpush1.msra.mxu0 %v850
        %1062 = vmatprep.subr.mxu0 %v857
        %1063 = vmatpush1.msra.mxu0 %v856
        %1064 = vmatprep.subr.mxu0 %v863
        %1065 = vmatpush1.msra.mxu0 %v862
        %1066 = vmatprep.subr.mxu0 %v869
        %1067 = vmatpush1.msra.mxu0 %v868
        %1068 = vmatprep.subr.mxu0 %v875
        %1069 = vmatpush1.msra.mxu0 %v874
        %1070 = vmatprep.subr.mxu0 %v881
        %1071 = vmatpush1.msra.mxu0 %v880
        %1072 = vmatprep.subr.mxu0 %v887
        %1073 = vmatpush1.msra.mxu0 %v886
        %1074 = vmatprep.subr.mxu0 %v893
        %1075 = vmatpush1.msra.mxu0 %v892
        %1076 = vmatprep.subr.mxu0 %v899
        %1077 = vmatpush1.msra.mxu0 %v898
        %1078 = vmatprep.subr.mxu0 %v905
        %1079 = vmatpush1.msra.mxu0 %v904
        %1080 = vmatprep.subr.mxu0 0.0
        %1081 = vmatpush1.msra.mxu0 0.0
        %1082 = vmatprep.subr.mxu0 0.0
        %1083 = vmatpush1.msra.mxu0 0.0
        %1084 = vmatprep.subr.mxu0 0.0
        %1085 = vmatpush1.msra.mxu0 0.0
        %1086 = vmatprep.subr.mxu0 0.0
        %1087 = vmatpush1.msra.mxu0 0.0
        %1088 = vmatprep.subr.mxu0 0.0
        %1089 = vmatpush1.msra.mxu0 0.0
        %1090 = vmatprep.subr.mxu0 0.0
        %1091 = vmatpush1.msra.mxu0 0.0
        %1092 = vmatprep.subr.mxu0 0.0
        %1093 = vmatpush1.msra.mxu0 0.0
        %1094 = vmatprep.subr.mxu0 0.0
        %1095 = vmatpush1.msra.mxu0 0.0
        %1096 = vmatprep.subr.mxu0 0.0
        %1097 = vmatpush1.msra.mxu0 0.0
        %1098 = vmatprep.subr.mxu0 0.0
        %1099 = vmatpush1.msra.mxu0 0.0
        %1100 = vmatprep.subr.mxu0 0.0
        %1101 = vmatpush1.msra.mxu0 0.0
        %1102 = vmatprep.subr.mxu0 0.0
        %1103 = vmatpush1.msra.mxu0 0.0
        %1104 = vmatprep.subr.mxu0 0.0
        %1105 = vmatpush1.msra.mxu0 0.0
        %1106 = vmatprep.subr.mxu0 0.0
        %1107 = vmatpush1.msra.mxu0 0.0
        %1108 = vmatprep.subr.mxu0 0.0
        %1109 = vmatpush1.msra.mxu0 0.0
        %1110 = vmatprep.subr.mxu0 0.0
        %1111 = vmatpush1.msra.mxu0 0.0
        %1112 = vmatprep.mubr.f32.mxu0 0.0
        %1113 = vmatmul.mubr.f32.gmra.mrb[0].mxu0 %v808
        %v1114 = vpop.f32.mrb[0].mxu0
        %v1115 = vadd.f32 0.0, %v1114
        %v1116 = vpop.f32.mrb[0].mxu0
        %v1117 = vadd.f32 0.0, %v1116
        %1118 = vdwg.mxu0
        %v1119 = vadd.f32 %v660, %v973
        %v1120 = vadd.f32 %v662, %v975
        %v1121 = vadd.f32 %v731, %v1044
        %v1122 = vadd.f32 %v733, %v1046
        %v1123 = vadd.f32 %v802, %v1115
        %v1124 = vadd.f32 %v804, %v1117
        %s1125 = sadd.s32 %s181, 3
        %s1126 = scalar_lea.vmem %s171, %s1125
        %v1127 = vld [vmem:[%s1126] sm:$0xff]
        %s1128 = scalar_lea.vmem [#allocation2], 2304
        %v1129 = vld [vmem:[%s1128] sm:$0xff]
        %v1130 = vld [vmem:[%s1128 + $0x8] sm:$0xff]
        %v1131 = vld [vmem:[%s1128 + $0x10] sm:$0xff]
        %v1132 = vld [vmem:[%s1128 + $0x18] sm:$0xff]
        %v1133 = vld [vmem:[%s1128 + $0x20] sm:$0xff]
        %v1134 = vld [vmem:[%s1128 + $0x28] sm:$0xff]
        %v1135 = vld [vmem:[%s1128 + $0x30] sm:$0xff]
        %v1136 = vld [vmem:[%s1128 + $0x38] sm:$0xff]
        %v1137 = vld [vmem:[%s1128 + $0x40] sm:$0xff]
        %v1138 = vld [vmem:[%s1128 + $0x48] sm:$0xff]
        %v1139 = vld [vmem:[%s1128 + $0x50] sm:$0xff]
        %v1140 = vld [vmem:[%s1128 + $0x58] sm:$0xff]
        %v1141 = vld [vmem:[%s1128 + $0x60] sm:$0xff]
        %v1142 = vld [vmem:[%s1128 + $0x68] sm:$0xff]
        %v1143 = vld [vmem:[%s1128 + $0x70] sm:$0xff]
        %v1144 = vld [vmem:[%s1128 + $0x78] sm:$0xff]
        %v1145 = vld [vmem:[%s1128 + $0x80] sm:$0xff]
        %v1146 = vld [vmem:[%s1128 + $0x88] sm:$0xff]
        %v1147 = vld [vmem:[%s1128 + $0x90] sm:$0xff]
        %v1148 = vld [vmem:[%s1128 + $0x98] sm:$0xff]
        %v1149 = vld [vmem:[%s1128 + $0xa0] sm:$0xff]
        %v1150 = vld [vmem:[%s1128 + $0xa8] sm:$0xff]
        %v1151 = vld [vmem:[%s1128 + $0xb0] sm:$0xff]
        %v1152 = vld [vmem:[%s1128 + $0xb8] sm:$0xff]
        %v1153 = vld [vmem:[%s1128 + $0xc0] sm:$0xff]
        %v1154 = vld [vmem:[%s1128 + $0xc8] sm:$0xff]
        %v1155 = vld [vmem:[%s1128 + $0xd0] sm:$0xff]
        %v1156 = vld [vmem:[%s1128 + $0xd8] sm:$0xff]
        %v1157 = vld [vmem:[%s1128 + $0xe0] sm:$0xff]
        %v1158 = vld [vmem:[%s1128 + $0xe8] sm:$0xff]
        %v1159 = vld [vmem:[%s1128 + $0xf0] sm:$0xff]
        %v1160 = vld [vmem:[%s1128 + $0xf8] sm:$0xff]
        %v1161 = vld [vmem:[%s1128 + $0x100] sm:$0xff]
        %v1162 = vld [vmem:[%s1128 + $0x108] sm:$0xff]
        %v1163 = vld [vmem:[%s1128 + $0x110] sm:$0xff]
        %v1164 = vld [vmem:[%s1128 + $0x118] sm:$0xff]
        %v1165 = vld [vmem:[%s1128 + $0x120] sm:$0xff]
        %v1166 = vld [vmem:[%s1128 + $0x128] sm:$0xff]
        %v1167 = vld [vmem:[%s1128 + $0x130] sm:$0xff]
        %v1168 = vld [vmem:[%s1128 + $0x138] sm:$0xff]
        %v1169 = vld [vmem:[%s1128 + $0x140] sm:$0xff]
        %v1170 = vld [vmem:[%s1128 + $0x148] sm:$0xff]
        %v1171 = vld [vmem:[%s1128 + $0x150] sm:$0xff]
        %v1172 = vld [vmem:[%s1128 + $0x158] sm:$0xff]
        %v1173 = vld [vmem:[%s1128 + $0x160] sm:$0xff]
        %v1174 = vld [vmem:[%s1128 + $0x168] sm:$0xff]
        %v1175 = vld [vmem:[%s1128 + $0x170] sm:$0xff]
        %v1176 = vld [vmem:[%s1128 + $0x178] sm:$0xff]
        %v1177 = vld [vmem:[%s1128 + $0x180] sm:$0xff]
        %v1178 = vld [vmem:[%s1128 + $0x188] sm:$0xff]
        %v1179 = vld [vmem:[%s1128 + $0x190] sm:$0xff]
        %v1180 = vld [vmem:[%s1128 + $0x198] sm:$0xff]
        %v1181 = vld [vmem:[%s1128 + $0x1a0] sm:$0xff]
        %v1182 = vld [vmem:[%s1128 + $0x1a8] sm:$0xff]
        %v1183 = vld [vmem:[%s1128 + $0x1b0] sm:$0xff]
        %v1184 = vld [vmem:[%s1128 + $0x1b8] sm:$0xff]
        %v1185 = vld [vmem:[%s1128 + $0x1c0] sm:$0xff]
        %v1186 = vld [vmem:[%s1128 + $0x1c8] sm:$0xff]
        %v1187 = vld [vmem:[%s1128 + $0x1d0] sm:$0xff]
        %v1188 = vld [vmem:[%s1128 + $0x1d8] sm:$0xff]
        %v1189 = vld [vmem:[%s1128 + $0x1e0] sm:$0xff]
        %v1190 = vld [vmem:[%s1128 + $0x1e8] sm:$0xff]
        %v1191 = vld [vmem:[%s1128 + $0x1f0] sm:$0xff]
        %v1192 = vld [vmem:[%s1128 + $0x1f8] sm:$0xff]
        %v1193 = vld [vmem:[%s1128 + $0x200] sm:$0xff]
        %v1194 = vld [vmem:[%s1128 + $0x208] sm:$0xff]
        %v1195 = vld [vmem:[%s1128 + $0x210] sm:$0xff]
        %v1196 = vld [vmem:[%s1128 + $0x218] sm:$0xff]
        %v1197 = vld [vmem:[%s1128 + $0x220] sm:$0xff]
        %v1198 = vld [vmem:[%s1128 + $0x228] sm:$0xff]
        %v1199 = vld [vmem:[%s1128 + $0x230] sm:$0xff]
        %v1200 = vld [vmem:[%s1128 + $0x238] sm:$0xff]
        %v1201 = vld [vmem:[%s1128 + $0x240] sm:$0xff]
        %v1202 = vld [vmem:[%s1128 + $0x248] sm:$0xff]
        %v1203 = vld [vmem:[%s1128 + $0x250] sm:$0xff]
        %v1204 = vld [vmem:[%s1128 + $0x258] sm:$0xff]
        %v1205 = vld [vmem:[%s1128 + $0x260] sm:$0xff]
        %v1206 = vld [vmem:[%s1128 + $0x268] sm:$0xff]
        %v1207 = vld [vmem:[%s1128 + $0x270] sm:$0xff]
        %v1208 = vld [vmem:[%s1128 + $0x278] sm:$0xff]
        %v1209 = vld [vmem:[%s1128 + $0x280] sm:$0xff]
        %v1210 = vld [vmem:[%s1128 + $0x288] sm:$0xff]
        %v1211 = vld [vmem:[%s1128 + $0x290] sm:$0xff]
        %v1212 = vld [vmem:[%s1128 + $0x298] sm:$0xff]
        %v1213 = vld [vmem:[%s1128 + $0x2a0] sm:$0xff]
        %v1214 = vld [vmem:[%s1128 + $0x2a8] sm:$0xff]
        %v1215 = vld [vmem:[%s1128 + $0x2b0] sm:$0xff]
        %v1216 = vld [vmem:[%s1128 + $0x2b8] sm:$0xff]
        %v1217 = vld [vmem:[%s1128 + $0x2c0] sm:$0xff]
        %v1218 = vld [vmem:[%s1128 + $0x2c8] sm:$0xff]
        %v1219 = vld [vmem:[%s1128 + $0x2d0] sm:$0xff]
        %v1220 = vld [vmem:[%s1128 + $0x2d8] sm:$0xff]
        %v1221 = vld [vmem:[%s1128 + $0x2e0] sm:$0xff]
        %v1222 = vld [vmem:[%s1128 + $0x2e8] sm:$0xff]
        %v1223 = vld [vmem:[%s1128 + $0x2f0] sm:$0xff]
        %v1224 = vld [vmem:[%s1128 + $0x2f8] sm:$0xff]
        %1225 = vmatprep.subr.mxu0 %v1130
        %1226 = vmatpush1.msra.mxu0 %v1129
        %1227 = vmatprep.subr.mxu0 %v1136
        %1228 = vmatpush1.msra.mxu0 %v1135
        %1229 = vmatprep.subr.mxu0 %v1142
        %1230 = vmatpush1.msra.mxu0 %v1141
        %1231 = vmatprep.subr.mxu0 %v1148
        %1232 = vmatpush1.msra.mxu0 %v1147
        %1233 = vmatprep.subr.mxu0 %v1154
        %1234 = vmatpush1.msra.mxu0 %v1153
        %1235 = vmatprep.subr.mxu0 %v1160
        %1236 = vmatpush1.msra.mxu0 %v1159
        %1237 = vmatprep.subr.mxu0 %v1166
        %1238 = vmatpush1.msra.mxu0 %v1165
        %1239 = vmatprep.subr.mxu0 %v1172
        %1240 = vmatpush1.msra.mxu0 %v1171
        %1241 = vmatprep.subr.mxu0 %v1178
        %1242 = vmatpush1.msra.mxu0 %v1177
        %1243 = vmatprep.subr.mxu0 %v1184
        %1244 = vmatpush1.msra.mxu0 %v1183
        %1245 = vmatprep.subr.mxu0 %v1190
        %1246 = vmatpush1.msra.mxu0 %v1189
        %1247 = vmatprep.subr.mxu0 %v1196
        %1248 = vmatpush1.msra.mxu0 %v1195
        %1249 = vmatprep.subr.mxu0 %v1202
        %1250 = vmatpush1.msra.mxu0 %v1201
        %1251 = vmatprep.subr.mxu0 %v1208
        %1252 = vmatpush1.msra.mxu0 %v1207
        %1253 = vmatprep.subr.mxu0 %v1214
        %1254 = vmatpush1.msra.mxu0 %v1213
        %1255 = vmatprep.subr.mxu0 %v1220
        %1256 = vmatpush1.msra.mxu0 %v1219
        %1257 = vmatprep.subr.mxu0 0.0
        %1258 = vmatpush1.msra.mxu0 0.0
        %1259 = vmatprep.subr.mxu0 0.0
        %1260 = vmatpush1.msra.mxu0 0.0
        %1261 = vmatprep.subr.mxu0 0.0
        %1262 = vmatpush1.msra.mxu0 0.0
        %1263 = vmatprep.subr.mxu0 0.0
        %1264 = vmatpush1.msra.mxu0 0.0
        %1265 = vmatprep.subr.mxu0 0.0
        %1266 = vmatpush1.msra.mxu0 0.0
        %1267 = vmatprep.subr.mxu0 0.0
        %1268 = vmatpush1.msra.mxu0 0.0
        %1269 = vmatprep.subr.mxu0 0.0
        %1270 = vmatpush1.msra.mxu0 0.0
        %1271 = vmatprep.subr.mxu0 0.0
        %1272 = vmatpush1.msra.mxu0 0.0
        %1273 = vmatprep.subr.mxu0 0.0
        %1274 = vmatpush1.msra.mxu0 0.0
        %1275 = vmatprep.subr.mxu0 0.0
        %1276 = vmatpush1.msra.mxu0 0.0
        %1277 = vmatprep.subr.mxu0 0.0
        %1278 = vmatpush1.msra.mxu0 0.0
        %1279 = vmatprep.subr.mxu0 0.0
        %1280 = vmatpush1.msra.mxu0 0.0
        %1281 = vmatprep.subr.mxu0 0.0
        %1282 = vmatpush1.msra.mxu0 0.0
        %1283 = vmatprep.subr.mxu0 0.0
        %1284 = vmatpush1.msra.mxu0 0.0
        %1285 = vmatprep.subr.mxu0 0.0
        %1286 = vmatpush1.msra.mxu0 0.0
        %1287 = vmatprep.subr.mxu0 0.0
        %1288 = vmatpush1.msra.mxu0 0.0
        %1289 = vmatprep.mubr.f32.mxu0 0.0
        %1290 = vmatmul.mubr.f32.gmra.mrb[0].mxu0 %v1127
        %v1291 = vpop.f32.mrb[0].mxu0
        %v1292 = vadd.f32 0.0, %v1291
        %v1293 = vpop.f32.mrb[0].mxu0
        %v1294 = vadd.f32 0.0, %v1293
        %1295 = vdwg.mxu0
        %1296 = vmatprep.subr.mxu0 %v1132
        %1297 = vmatpush1.msra.mxu0 %v1131
        %1298 = vmatprep.subr.mxu0 %v1138
        %1299 = vmatpush1.msra.mxu0 %v1137
        %1300 = vmatprep.subr.mxu0 %v1144
        %1301 = vmatpush1.msra.mxu0 %v1143
        %1302 = vmatprep.subr.mxu0 %v1150
        %1303 = vmatpush1.msra.mxu0 %v1149
        %1304 = vmatprep.subr.mxu0 %v1156
        %1305 = vmatpush1.msra.mxu0 %v1155
        %1306 = vmatprep.subr.mxu0 %v1162
        %1307 = vmatpush1.msra.mxu0 %v1161
        %1308 = vmatprep.subr.mxu0 %v1168
        %1309 = vmatpush1.msra.mxu0 %v1167
        %1310 = vmatprep.subr.mxu0 %v1174
        %1311 = vmatpush1.msra.mxu0 %v1173
        %1312 = vmatprep.subr.mxu0 %v1180
        %1313 = vmatpush1.msra.mxu0 %v1179
        %1314 = vmatprep.subr.mxu0 %v1186
        %1315 = vmatpush1.msra.mxu0 %v1185
        %1316 = vmatprep.subr.mxu0 %v1192
        %1317 = vmatpush1.msra.mxu0 %v1191
        %1318 = vmatprep.subr.mxu0 %v1198
        %1319 = vmatpush1.msra.mxu0 %v1197
        %1320 = vmatprep.subr.mxu0 %v1204
        %1321 = vmatpush1.msra.mxu0 %v1203
        %1322 = vmatprep.subr.mxu0 %v1210
        %1323 = vmatpush1.msra.mxu0 %v1209
        %1324 = vmatprep.subr.mxu0 %v1216
        %1325 = vmatpush1.msra.mxu0 %v1215
        %1326 = vmatprep.subr.mxu0 %v1222
        %1327 = vmatpush1.msra.mxu0 %v1221
        %1328 = vmatprep.subr.mxu0 0.0
        %1329 = vmatpush1.msra.mxu0 0.0
        %1330 = vmatprep.subr.mxu0 0.0
        %1331 = vmatpush1.msra.mxu0 0.0
        %1332 = vmatprep.subr.mxu0 0.0
        %1333 = vmatpush1.msra.mxu0 0.0
        %1334 = vmatprep.subr.mxu0 0.0
        %1335 = vmatpush1.msra.mxu0 0.0
        %1336 = vmatprep.subr.mxu0 0.0
        %1337 = vmatpush1.msra.mxu0 0.0
        %1338 = vmatprep.subr.mxu0 0.0
        %1339 = vmatpush1.msra.mxu0 0.0
        %1340 = vmatprep.subr.mxu0 0.0
        %1341 = vmatpush1.msra.mxu0 0.0
        %1342 = vmatprep.subr.mxu0 0.0
        %1343 = vmatpush1.msra.mxu0 0.0
        %1344 = vmatprep.subr.mxu0 0.0
        %1345 = vmatpush1.msra.mxu0 0.0
        %1346 = vmatprep.subr.mxu0 0.0
        %1347 = vmatpush1.msra.mxu0 0.0
        %1348 = vmatprep.subr.mxu0 0.0
        %1349 = vmatpush1.msra.mxu0 0.0
        %1350 = vmatprep.subr.mxu0 0.0
        %1351 = vmatpush1.msra.mxu0 0.0
        %1352 = vmatprep.subr.mxu0 0.0
        %1353 = vmatpush1.msra.mxu0 0.0
        %1354 = vmatprep.subr.mxu0 0.0
        %1355 = vmatpush1.msra.mxu0 0.0
        %1356 = vmatprep.subr.mxu0 0.0
        %1357 = vmatpush1.msra.mxu0 0.0
        %1358 = vmatprep.subr.mxu0 0.0
        %1359 = vmatpush1.msra.mxu0 0.0
        %1360 = vmatprep.mubr.f32.mxu0 0.0
        %1361 = vmatmul.mubr.f32.gmra.mrb[0].mxu0 %v1127
        %v1362 = vpop.f32.mrb[0].mxu0
        %v1363 = vadd.f32 0.0, %v1362
        %v1364 = vpop.f32.mrb[0].mxu0
        %v1365 = vadd.f32 0.0, %v1364
        %1366 = vdwg.mxu0
        %1367 = vmatprep.subr.mxu0 %v1134
        %1368 = vmatpush1.msra.mxu0 %v1133
        %1369 = vmatprep.subr.mxu0 %v1140
        %1370 = vmatpush1.msra.mxu0 %v1139
        %1371 = vmatprep.subr.mxu0 %v1146
        %1372 = vmatpush1.msra.mxu0 %v1145
        %1373 = vmatprep.subr.mxu0 %v1152
        %1374 = vmatpush1.msra.mxu0 %v1151
        %1375 = vmatprep.subr.mxu0 %v1158
        %1376 = vmatpush1.msra.mxu0 %v1157
        %1377 = vmatprep.subr.mxu0 %v1164
        %1378 = vmatpush1.msra.mxu0 %v1163
        %1379 = vmatprep.subr.mxu0 %v1170
        %1380 = vmatpush1.msra.mxu0 %v1169
        %1381 = vmatprep.subr.mxu0 %v1176
        %1382 = vmatpush1.msra.mxu0 %v1175
        %1383 = vmatprep.subr.mxu0 %v1182
        %1384 = vmatpush1.msra.mxu0 %v1181
        %1385 = vmatprep.subr.mxu0 %v1188
        %1386 = vmatpush1.msra.mxu0 %v1187
        %1387 = vmatprep.subr.mxu0 %v1194
        %1388 = vmatpush1.msra.mxu0 %v1193
        %1389 = vmatprep.subr.mxu0 %v1200
        %1390 = vmatpush1.msra.mxu0 %v1199
        %1391 = vmatprep.subr.mxu0 %v1206
        %1392 = vmatpush1.msra.mxu0 %v1205
        %1393 = vmatprep.subr.mxu0 %v1212
        %1394 = vmatpush1.msra.mxu0 %v1211
        %1395 = vmatprep.subr.mxu0 %v1218
        %1396 = vmatpush1.msra.mxu0 %v1217
        %1397 = vmatprep.subr.mxu0 %v1224
        %1398 = vmatpush1.msra.mxu0 %v1223
        %1399 = vmatprep.subr.mxu0 0.0
        %1400 = vmatpush1.msra.mxu0 0.0
        %1401 = vmatprep.subr.mxu0 0.0
        %1402 = vmatpush1.msra.mxu0 0.0
        %1403 = vmatprep.subr.mxu0 0.0
        %1404 = vmatpush1.msra.mxu0 0.0
        %1405 = vmatprep.subr.mxu0 0.0
        %1406 = vmatpush1.msra.mxu0 0.0
        %1407 = vmatprep.subr.mxu0 0.0
        %1408 = vmatpush1.msra.mxu0 0.0
        %1409 = vmatprep.subr.mxu0 0.0
        %1410 = vmatpush1.msra.mxu0 0.0
        %1411 = vmatprep.subr.mxu0 0.0
        %1412 = vmatpush1.msra.mxu0 0.0
        %1413 = vmatprep.subr.mxu0 0.0
        %1414 = vmatpush1.msra.mxu0 0.0
        %1415 = vmatprep.subr.mxu0 0.0
        %1416 = vmatpush1.msra.mxu0 0.0
        %1417 = vmatprep.subr.mxu0 0.0
        %1418 = vmatpush1.msra.mxu0 0.0
        %1419 = vmatprep.subr.mxu0 0.0
        %1420 = vmatpush1.msra.mxu0 0.0
        %1421 = vmatprep.subr.mxu0 0.0
        %1422 = vmatpush1.msra.mxu0 0.0
        %1423 = vmatprep.subr.mxu0 0.0
        %1424 = vmatpush1.msra.mxu0 0.0
        %1425 = vmatprep.subr.mxu0 0.0
        %1426 = vmatpush1.msra.mxu0 0.0
        %1427 = vmatprep.subr.mxu0 0.0
        %1428 = vmatpush1.msra.mxu0 0.0
        %1429 = vmatprep.subr.mxu0 0.0
        %1430 = vmatpush1.msra.mxu0 0.0
        %1431 = vmatprep.mubr.f32.mxu0 0.0
        %1432 = vmatmul.mubr.f32.gmra.mrb[0].mxu0 %v1127
        %v1433 = vpop.f32.mrb[0].mxu0
        %v1434 = vadd.f32 0.0, %v1433
        %v1435 = vpop.f32.mrb[0].mxu0
        %v1436 = vadd.f32 0.0, %v1435
        %1437 = vdwg.mxu0
        %v1438 = vadd.f32 %v1119, %v1292
        %v1439 = vadd.f32 %v1120, %v1294
        %v1440 = vadd.f32 %v1121, %v1363
        %v1441 = vadd.f32 %v1122, %v1365
        %v1442 = vadd.f32 %v1123, %v1434
        %v1443 = vadd.f32 %v1124, %v1436
        %v1444 = vmul.f32 %v1438, %v1438
        %v1445 = vmul.f32 %v1439, %v1439
        %v1446 = vmul.f32 %v1440, %v1440
        %v1447 = vmul.f32 %v1441, %v1441
        %v1448 = vmul.f32 %v1442, %v1442
        %v1449 = vmul.f32 %v1443, %v1443
        %v1450 = vadd.f32 %v1444, %v1447
        %v1451 = vadd.f32 %v1445, %v1448
        %v1452 = vadd.f32 %v1446, %v1449
        %v1453 = vrsqrt.pop %v1450
        %v1454 = vmul.f32 %v1450, %v1453
        %vm1455 = vcmp.eq.f32.partialorder %v1450, inf
        %v1456 = vsel %vm1455, %v1450, %v1454
        %vm1457 = vcmp.eq.f32.partialorder %v1450, 0.0
        %v1458 = vand.u32 %v1450, 2147483648
        %v1459 = vsel %vm1457, %v1458, %v1456
        %v1460 = vrsqrt.pop %v1451
        %v1461 = vmul.f32 %v1451, %v1460
        %vm1462 = vcmp.eq.f32.partialorder %v1451, inf
        %v1463 = vsel %vm1462, %v1451, %v1461
        %vm1464 = vcmp.eq.f32.partialorder %v1451, 0.0
        %v1465 = vand.u32 %v1451, 2147483648
        %v1466 = vsel %vm1464, %v1465, %v1463
        %v1467 = vrsqrt.pop %v1452
        %v1468 = vmul.f32 %v1452, %v1467
        %vm1469 = vcmp.eq.f32.partialorder %v1452, inf
        %v1470 = vsel %vm1469, %v1452, %v1468
        %vm1471 = vcmp.eq.f32.partialorder %v1452, 0.0
        %v1472 = vand.u32 %v1452, 2147483648
        %v1473 = vsel %vm1471, %v1472, %v1470
        %1474 = vst [vmem:[%s180] sm:$0xff] %v1459
        %1475 = vst [vmem:[%s180 + $0x8] sm:$0xff] %v1466
        %1476 = vst [vmem:[%s180 + $0x10] sm:$0xff] %v1473
        %p1477 = scmp.lt.s32.totalorder %s18, 1
        %s1478 = scalar_select %p1477, %s18, 1
        %p1479 = scmp.lt.s32.totalorder %s19, 2
        %s1480 = scalar_select %p1479, %s19, 2
        %s1481 = smul.addr %s1480, 3
        %s1482 = smul.addr %s1478, 9
        %s1483 = sadd.s32 %s1481, %s1482
        %s1484 = smul.addr %s1483, 8
        %s1485 = scalar_lea.vmem %s2, %s1484
        // Predicated region
        $region33: #{stft_mag.1} parent=27 // pred_check
          %p1486 = pneg %p93
        $region34: #{stft_mag.1} parent=27 // pred_check_branch
          %1488 = sbr.rel (%p1486) target = $region36
        $region35: #{stft_mag.1} parent=27 // pred_region
          _
        $region36: #{stft_mag.1} parent=27 // pred_fallthru
          _
      $region28: #{stft_mag.1} parent=5 // pred_fallthru
        _
      %p1489 = scmp.le.s32.totalorder 2, %s9
      // Predicated region
      $region37: #{stft_mag.1} parent=5 // pred_check
        %p1490 = pneg %p1489
      $region38: #{stft_mag.1} parent=5 // pred_check_branch
        %1492 = sbr.rel (%p1490) target = $region40
      $region39: #{stft_mag.1} parent=5 // pred_region
        %s1493 = ssub.s32 %s9, 2
        // Predicated region
        $region41: #{stft_mag.1} parent=39 // pred_check
          %p1494 = pneg %p99
        $region42: #{stft_mag.1} parent=39 // pred_check_branch
          %1496 = sbr.rel (%p1494) target = $region44
        $region43: #{stft_mag.1} parent=39 // pred_region
          %p1497 = scmp.lt.s32.totalorder %s20, 1
          %s1498 = scalar_select %p1497, %s20, 1
          %p1499 = scmp.lt.s32.totalorder %s21, 2
          %s1500 = scalar_select %p1499, %s21, 2
          %s1501 = smul.addr %s1500, 3
          %s1502 = smul.addr %s1498, 9
          %s1503 = sadd.s32 %s1501, %s1502
          %s1504 = smul.addr %s1503, 8
          %s1505 = scalar_lea.vmem %s2, %s1504
        $region44: #{stft_mag.1} parent=39 // pred_fallthru
          _
      $region40: #{stft_mag.1} parent=5 // pred_fallthru
        _
    $region6: #{stft_mag.1} parent=1 // loop_footer
      %s13 = sadd.s32 1, %s9
    $region7: #{stft_mag.1} parent=1 // loop_footer_branch
      %8 = sbr.rel target = $region3
    $region8: #{stft_mag.1} parent=1 // loop_exit
      _
    %1506 = vsyncpa [#allocation3], 1
    %s1507 = scalar_lea.sflag [#allocation3], 1
    %1508 = vsyncpa %s1507, 1

</llo_original>
